<compile_context>
chip_gen: v7x
topology: tpu7x:2x2x1
jax: 0.10.0
libtpu: 0.0.40
codegen_flags: <defaults>
</compile_context>

<pallas_src>
import functools
import math

import numpy as np
import jax
import jax.numpy as jnp
from jax.experimental import pallas as pl
from jax.experimental.pallas import tpu as pltpu

_MiB = 1024 * 1024


# ----------------------------------------------------------------------------
# small host helpers
# ----------------------------------------------------------------------------
def _round_up(x, m):
    return ((x + m - 1) // m) * m


def _round_down(x, m):
    return (x // m) * m


@functools.lru_cache(maxsize=1)
def _n_parallel_splits():
    """Split the K reduction across TensorCores only on 2-TC chips (v7x)."""
    try:
        kind = jax.devices()[0].device_kind.lower()
    except Exception:
        return 1
    return 2 if "v7" in kind else 1


# ----------------------------------------------------------------------------
# Pallas kernels
# ----------------------------------------------------------------------------
def _kspace_kernel(r_ref, kt_ref, qt_ref, w_ref, o_ref, acc_ref):
    """Reciprocal-space Ewald energy; K axis tiled as a reduction grid axis.

    grid = (n_par, tiles_per_par): axis 0 is an optional parallel split of the
    K range (2 TensorCores on v7x), axis 1 is the sequential K-tile reduction.

    r_ref  : (n_pad, 3)       positions, centroid-subtracted (resident)
    kt_ref : (3, TK)          k-vectors of this tile, transposed (streamed)
    qt_ref : (nq_pad, n_pad)  charges transposed (resident)
    w_ref  : (TK, 1)          norm * factor * exp(-s^2/2 k^2)/(k^2 V), 0 on pad
    o_ref  : (1, nq_pad, 1)   per-channel potential for this parallel split
    acc_ref: (nq_pad, 1) f32  VMEM accumulator scratch
    """
    # program_id / num_programs bound at kernel top level ONLY (binding them
    # inside pl.when bodies breaks the interpret lowering).
    k_idx = pl.program_id(1)
    k_last = pl.num_programs(1) - 1

    @pl.when(k_idx == 0)
    def _init():
        acc_ref[...] = jnp.zeros_like(acc_ref)

    hi = jax.lax.Precision.HIGHEST

    # k . r on the MXU (contraction length 3). HIGHEST keeps f32 phase
    # accuracy (default f32 dot may route through single-pass bf16).
    kdr = jnp.dot(r_ref[...], kt_ref[...],
                  preferred_element_type=jnp.float32, precision=hi)   # (n_pad, TK)
    c = jnp.cos(kdr)
    s = jnp.sin(kdr)

    # Structure factor S(k) = sum_i q_i e^{i k.r_i}  (MXU matmuls).
    qt = qt_ref[...]
    s_re = jnp.dot(qt, c, preferred_element_type=jnp.float32, precision=hi)
    s_im = jnp.dot(qt, s, preferred_element_type=jnp.float32, precision=hi)
    s_sq = s_re * s_re + s_im * s_im                                   # (nq_pad, TK)

    # Weighted K reduction as an MXU dot against the (TK, 1) weight column.
    acc_ref[...] += jnp.dot(s_sq, w_ref[...],
                            preferred_element_type=jnp.float32, precision=hi)

    @pl.when(k_idx == k_last)
    def _finalize():
        o_ref[...] = jnp.reshape(acc_ref[...], o_ref.shape).astype(o_ref.dtype)


def _realspace_kernel(ri_ref, r_ref, qti_ref, qt_ref, o_ref, acc_ref, *,
                      ti, inv_sigma_sqrt2):
    """Screened realspace pair sum, row-tiled: sum_{i!=j,c} q_ic q_jc erf(d/..)/d.

    grid = (n_pad // TI,), row blocks of size TI.
    ri_ref : (TI, 3)          row-block positions
    r_ref  : (n_pad, 3)       all positions (resident)
    qti_ref: (nq_pad, TI)     row-block charges transposed
    qt_ref : (nq_pad, n_pad)  all charges transposed (resident)
    o_ref  : (1, 1)           raw pair sum (scaling done on host)
    acc_ref: (1, 1) f32       scalar VMEM accumulator
    """
    i_idx = pl.program_id(0)
    i_last = pl.num_programs(0) - 1

    @pl.when(i_idx == 0)
    def _init():
        acc_ref[...] = jnp.zeros_like(acc_ref)

    hi = jax.lax.Precision.HIGHEST
    ri = ri_ref[...]                                  # (TI, 3)
    rj = r_ref[...]                                   # (n_pad, 3)

    # |ri - rj|^2 from a Gram matrix on the MXU (positions are centroid
    # subtracted on the host to limit cancellation).
    gram = jax.lax.dot_general(ri, rj, (((1,), (1,)), ((), ())),
                               preferred_element_type=jnp.float32, precision=hi)
    d_sq = (jnp.sum(ri * ri, axis=1)[:, None]
            + jnp.sum(rj * rj, axis=1)[None, :] - 2.0 * gram)
    d_sq = jnp.maximum(d_sq, 1e-12)                   # keep diag / pad finite
    inv_d = jax.lax.rsqrt(d_sq)                       # EUP, replaces sqrt+div
    dist = d_sq * inv_d

    rows = jax.lax.broadcasted_iota(jnp.int32, d_sq.shape, 0) + i_idx * ti
    cols = jax.lax.broadcasted_iota(jnp.int32, d_sq.shape, 1)
    offdiag = (rows != cols).astype(jnp.float32)

    # TODO(synk): jax.lax.erf Mosaic lowering is not exercised by the demo
    # (all demo cells have det > 1e-6 -> k-space branch only).
    f = offdiag * jax.lax.erf(dist * inv_sigma_sqrt2) * inv_d          # (TI, n_pad)

    # sum_c q_block[:,c]^T F q_all[:,c] via one MXU matmul + elementwise reduce.
    a = jax.lax.dot_general(qti_ref[...], f, (((1,), (0,)), ((), ())),
                            preferred_element_type=jnp.float32, precision=hi)
    acc_ref[...] += jnp.sum(a * qt_ref[...])

    @pl.when(i_idx == i_last)
    def _finalize():
        o_ref[...] = acc_ref[...].astype(o_ref.dtype)


# ----------------------------------------------------------------------------
# cached pallas_call builders (shape-bucketed -> compile reuse)
# ----------------------------------------------------------------------------
@functools.lru_cache(maxsize=None)
def _build_kspace_fn(n_pad, nq_pad, tk, tiles_per_par, n_par):
    # VMEM budget: double-buffered in/out blocks + live f32 intermediates
    # (kdr/cos/sin + s_re/s_im/s_sq) + accumulator, 1.5x headroom, 48 MiB cap
    # (v7x has 64 MiB VMEM), 24 MiB floor (v5e scoped default is only 16 MiB).
    blk = 4 * (2 * (n_pad * 3 + 3 * tk + nq_pad * n_pad + tk + nq_pad)
               + nq_pad
               + 3 * n_pad * tk
               + 3 * nq_pad * tk)
    vmem_limit = int(min(48 * _MiB, max(24 * _MiB, int(blk * 1.5))))

    fn = pl.pallas_call(
        _kspace_kernel,
        out_shape=jax.ShapeDtypeStruct((n_par, nq_pad, 1), jnp.float32),
        grid=(n_par, tiles_per_par),
        in_specs=[
            pl.BlockSpec((n_pad, 3), lambda p, k: (0, 0)),                   # r (resident)
            pl.BlockSpec((3, tk), lambda p, k: (0, p * tiles_per_par + k)),  # k^T (streamed)
            pl.BlockSpec((nq_pad, n_pad), lambda p, k: (0, 0)),              # q^T (resident)
            pl.BlockSpec((tk, 1), lambda p, k: (p * tiles_per_par + k, 0)),  # weights
        ],
        out_specs=pl.BlockSpec((1, nq_pad, 1), lambda p, k: (p, 0, 0)),
        scratch_shapes=[pltpu.VMEM((nq_pad, 1), jnp.float32)],
        compiler_params=pltpu.CompilerParams(
            dimension_semantics=("parallel", "arbitrary"),
            vmem_limit_bytes=vmem_limit),
    )
    return jax.jit(fn)


@functools.lru_cache(maxsize=None)
def _build_realspace_fn(n_pad, nq_pad, ti, sigma):
    kernel = functools.partial(
        _realspace_kernel, ti=ti, inv_sigma_sqrt2=1.0 / (sigma * math.sqrt(2.0)))
    n_tiles = n_pad // ti
    blk = 4 * (2 * (ti * 3 + n_pad * 3 + nq_pad * ti + nq_pad * n_pad + 1)
               + 1 + 6 * ti * n_pad + nq_pad * n_pad)
    vmem_limit = int(min(48 * _MiB, max(24 * _MiB, int(blk * 1.5))))

    fn = pl.pallas_call(
        kernel,
        out_shape=jax.ShapeDtypeStruct((1, 1), jnp.float32),
        grid=(n_tiles,),
        in_specs=[
            pl.BlockSpec((ti, 3), lambda i: (i, 0)),          # row block of r
            pl.BlockSpec((n_pad, 3), lambda i: (0, 0)),       # full r (resident)
            pl.BlockSpec((nq_pad, ti), lambda i: (0, i)),     # row block of q^T
            pl.BlockSpec((nq_pad, n_pad), lambda i: (0, 0)),  # full q^T (resident)
        ],
        out_specs=pl.BlockSpec((1, 1), lambda i: (0, 0)),
        scratch_shapes=[pltpu.VMEM((1, 1), jnp.float32)],
        compiler_params=pltpu.CompilerParams(
            dimension_semantics=("arbitrary",),
            vmem_limit_bytes=vmem_limit),
    )
    return jax.jit(fn)


# ----------------------------------------------------------------------------
# Module wrapper mirroring the PyTorch Ewald.forward
# ----------------------------------------------------------------------------
class EwaldPallas:
    def __init__(self, dl=2.0, sigma=1.0, remove_self_interaction=True,
                 norm_factor=90.0474):
        self.dl = dl
        self.sigma = float(sigma)
        self.sigma_sq_half = sigma ** 2 / 2.0
        self.twopi = 2.0 * math.pi
        self.remove_self_interaction = bool(remove_self_interaction)
        self.norm_factor = float(norm_factor)
        self.k_sq_max = (self.twopi / self.dl) ** 2

    def __call__(self, q, r, cell, batch=None):
        q_np = np.asarray(q, dtype=np.float64)
        r_np = np.asarray(r, dtype=np.float64)
        if q_np.ndim == 1:
            q_np = q_np[:, None]
        n, d = r_np.shape
        assert d == 3, "r dimension error"
        assert n == q_np.shape[0], "q dimension error"
        if batch is None:
            batch_np = np.zeros(n, dtype=np.int64)
        else:
            batch_np = np.asarray(batch)
        cell_np = None if cell is None else np.asarray(cell, dtype=np.float64)

        # TODO(synk): structures sharing the same (n_pad, tk, nq_pad) bucket
        # could be batched into one pallas_call with a leading grid axis; kept
        # as a per-structure dispatch to mirror the PyTorch loop.
        results = []
        for i in np.unique(batch_np):
            m = batch_np == i
            r_now = r_np[m]
            q_now = q_np[m]
            box_now = None if cell_np is None else cell_np[int(i)]
            if box_now is None or np.linalg.det(box_now) < 1e-6:
                results.append(self._realspace(r_now, q_now))
            else:
                results.append(self._triclinic(r_now, q_now, box_now))
        # Same semantics as torch.stack(...).sum(dim=1).
        return jnp.stack(results, axis=0).sum(axis=1)

    # -------------------- realspace branch --------------------
    def _realspace(self, r_now, q_now):
        n_atoms, n_q = q_now.shape
        # Pair distances are translation invariant; centroid subtraction
        # avoids Gram-matrix cancellation in f32.
        r_now = r_now - r_now.mean(axis=0, keepdims=True)
        nq_pad = _round_up(max(n_q, 1), 8)

        if n_atoms <= 512:
            ti = n_pad = _round_up(max(n_atoms, 8), 8)        # single tile
        else:
            n_est = _round_up(n_atoms, 128)
            # ~6 live (TI, n_pad) f32 blocks kept well under v7x VMEM.
            ti = max(128, min(512, _round_down(1_300_000 // n_est, 128)))
            n_pad = _round_up(n_atoms, ti)
            # TODO(synk): very large systems (n_pad >> 10k) would also need
            # column tiling of the pair matrix.

        r_p = np.zeros((n_pad, 3), np.float32)
        r_p[:n_atoms] = r_now
        qt_p = np.zeros((nq_pad, n_pad), np.float32)
        qt_p[:n_q, :n_atoms] = q_now.T

        fn = _build_realspace_fn(n_pad, nq_pad, ti, self.sigma)
        raw = fn(jnp.asarray(r_p), jnp.asarray(qt_p))          # (1, 1) raw pair sum
        pot = raw[0] / self.twopi / 2.0                        # (1,)
        if not self.remove_self_interaction:
            pot = pot + float((q_now ** 2).sum()
                              / (self.sigma * self.twopi ** 1.5))
        return (pot * self.norm_factor).astype(jnp.float32)    # shape (1,)

    # -------------------- k-space (triclinic) branch --------------------
    def _triclinic(self, r_now, q_now, box64):
        twopi = self.twopi
        # ---- host glue: k-grid construction + cutoff/hemisphere compaction ----
        G = twopi * np.linalg.inv(box64).T
        norms = np.linalg.norm(box64, axis=1)
        Nk = [max(1, int(nn / self.dl)) for nn in norms]
        grids = [np.arange(-N, N + 1) for N in Nk]
        nvec = np.stack(np.meshgrid(*grids, indexing="ij"),
                        axis=-1).reshape(-1, 3).astype(np.float64)
        kvec = nvec @ G
        k_sq = (kvec ** 2).sum(axis=-1)
        mask = (k_sq > 0.0) & (k_sq <= self.k_sq_max)
        kvec, k_sq, nvec = kvec[mask], k_sq[mask], nvec[mask]
        nonzero = (nvec != 0).astype(np.int64)
        first_nz = np.argmax(nonzero, axis=1)
        sign = np.take_along_axis(nvec, first_nz[:, None], axis=1)[:, 0]
        hemi = (sign > 0) | (nvec == 0).all(axis=1)
        kvec, k_sq = kvec[hemi], k_sq[hemi]
        factors = np.where((nvec[hemi] == 0).all(axis=1), 1.0, 2.0)
        volume = np.linalg.det(box64)
        # Per-k weight (float64): hemisphere factor * gaussian / k^2 / V * norm.
        w_eff = (self.norm_factor * factors
                 * np.exp(-self.sigma_sq_half * k_sq) / k_sq / volume)

        # |S(k)|^2 is translation invariant -> centroid subtraction keeps the
        # f32 k.r phases small.
        r_now = r_now - r_now.mean(axis=0, keepdims=True)

        # ---- TPU-friendly padding (multiples of 8 / TK only, no pow-2 waste) ----
        n_atoms = r_now.shape[0]
        n_q = q_now.shape[1]
        n_pad = _round_up(max(n_atoms, 8), 8)
        nq_pad = _round_up(max(n_q, 1), 8)

        K = kvec.shape[0]
        # TK: lane-dense multiple of 128; sized so the three (n_pad, TK) f32
        # intermediates stay ~<= 24 MiB (v7x VMEM), larger for small systems
        # where per-grid-step overhead dominates.
        tk_cap = max(128, min(4096, _round_down(2_000_000 // n_pad, 128)))
        tk = min(tk_cap, _round_up(max(K, 1), 128))
        n_tiles = max(1, -(-K // tk))
        n_par = _n_parallel_splits()
        if n_par > 1 and n_tiles >= 2:
            n_tiles = _round_up(n_tiles, n_par)
        else:
            n_par = 1
        tiles_per_par = n_tiles // n_par
        k_pad = n_tiles * tk

        r_p = np.zeros((n_pad, 3), np.float32)
        r_p[:n_atoms] = r_now
        qt_p = np.zeros((nq_pad, n_pad), np.float32)
        qt_p[:n_q, :n_atoms] = q_now.T
        kt_p = np.zeros((3, k_pad), np.float32)
        kt_p[:, :K] = kvec.T
        w_p = np.zeros((k_pad, 1), np.float32)
        w_p[:K, 0] = w_eff                         # padded k entries -> zero weight

        fn = _build_kspace_fn(n_pad, nq_pad, tk, tiles_per_par, n_par)
        out = fn(jnp.asarray(r_p), jnp.asarray(kt_p), jnp.asarray(qt_p),
                 jnp.asarray(w_p))                 # (n_par, nq_pad, 1)
        pot = out.sum(axis=0)[:n_q, 0]             # (n_q,)

        if self.remove_self_interaction:
            # Self energy computed on the host in float64 (hoisted out of kernel).
            self_e = float((q_now ** 2).sum() / (self.sigma * twopi ** 1.5))
            pot = pot - self.norm_factor * self_e
        return pot.astype(jnp.float32)


# ----------------------------------------------------------------------------
# Pure numpy (float64) reference of the PyTorch triclinic branch, for checking.
# ----------------------------------------------------------------------------
def _reference_triclinic(r, q, box, dl, sigma, remove_self, norm_factor):
    twopi = 2.0 * np.pi
    k_sq_max = (twopi / dl) ** 2
    G = twopi * np.linalg.inv(box).T
    norms = np.linalg.norm(box, axis=1)
    Nk = [max(1, int(nn / dl)) for nn in norms]
    grids = [np.arange(-N, N + 1) for N in Nk]
    nvec = np.stack(np.meshgrid(*grids, indexing="ij"), axis=-1).reshape(-1, 3)
    nvec = nvec.astype(np.float64)
    kvec = nvec @ G
    k_sq = (kvec ** 2).sum(axis=1)
    m = (k_sq > 0) & (k_sq <= k_sq_max)
    kvec, k_sq, nvec = kvec[m], k_sq[m], nvec[m]
    nonzero = (nvec != 0).astype(int)
    first = np.argmax(nonzero, axis=1)
    sign = np.take_along_axis(nvec, first[:, None], axis=1)[:, 0]
    hemi = (sign > 0) | (nvec == 0).all(axis=1)
    kvec, k_sq = kvec[hemi], k_sq[hemi]
    factors = np.where((nvec[hemi] == 0).all(axis=1), 1.0, 2.0)
    kdr = r @ kvec.T
    s_re = (q[:, :, None] * np.cos(kdr)[:, None, :]).sum(axis=0)
    s_im = (q[:, :, None] * np.sin(kdr)[:, None, :]).sum(axis=0)
    s_sq = s_re ** 2 + s_im ** 2
    kfac = np.exp(-(sigma ** 2 / 2.0) * k_sq) / k_sq
    vol = np.linalg.det(box)
    pot = (factors * kfac * s_sq).sum(axis=1) / vol
    if remove_self:
        pot = pot - (q ** 2).sum() / (sigma * twopi ** 1.5)
    return pot * norm_factor


def ewald_reference(q, r, cell, batch, dl=2.0, sigma=1.0,
                    remove_self=True, norm_factor=90.0474):
    q = np.asarray(q, np.float64)
    r = np.asarray(r, np.float64)
    if q.ndim == 1:
        q = q[:, None]
    cell = np.asarray(cell, np.float64)
    batch = np.asarray(batch)
    results = []
    for i in np.unique(batch):
        m = batch == i
        results.append(_reference_triclinic(r[m], q[m], cell[int(i)],
                                            dl, sigma, remove_self, norm_factor))
    return np.stack(results, axis=0).sum(axis=1)


# ----------------------------------------------------------------------------
if __name__ == "__main__":
    key = jax.random.PRNGKey(0)
    kq, kr = jax.random.split(key)

    n_atoms = 16
    r = jax.random.uniform(kr, (n_atoms, 3), dtype=jnp.float32,
                           minval=0.0, maxval=6.0)
    q = jax.random.normal(kq, (n_atoms,), dtype=jnp.float32)
    batch = jnp.concatenate([jnp.zeros(8, jnp.int32), jnp.ones(8, jnp.int32)])
    cell = jnp.asarray(np.stack([
        np.array([[6.0, 0.0, 0.0], [0.0, 6.0, 0.0], [0.0, 0.0, 6.0]]),
        np.array([[6.0, 0.0, 0.0], [1.0, 5.5, 0.0], [0.5, 0.3, 6.2]]),
    ]).astype(np.float32))

    model = EwaldPallas()
    out = model(q, r, cell, batch)
    out = jax.block_until_ready(out)

    assert out.shape == (2,), out.shape

    ref = ewald_reference(q, r, cell, batch)
    np.testing.assert_allclose(np.asarray(out), ref, rtol=2e-2, atol=1e-2)

    print("KERNEL_OK")
</pallas_src>

<mosaic_0001>
module attributes {stable_mosaic.version = 11 : i64} {
  func.func @_kspace_kernel(%arg0: i32, %arg1: i32, %arg2: memref<8x3xf32, #tpu.memory_space<vmem>>, %arg3: memref<3x128xf32, #tpu.memory_space<vmem>>, %arg4: memref<8x8xf32, #tpu.memory_space<vmem>>, %arg5: memref<128x1xf32, #tpu.memory_space<vmem>>, %arg6: memref<1x8x1xf32, #tpu.memory_space<vmem>>, %arg7: memref<8x1xf32, #tpu.memory_space<vmem>>) attributes {dimension_semantics = [#tpu.dimension_semantics<parallel>, #tpu.dimension_semantics<arbitrary>], iteration_bounds = array<i64: 1, 1>, scalar_prefetch = 0 : i64, scratch_operands = 1 : i64, tpu.core_type = #tpu.core_type<tc>, window_params = [{pipeline_mode = #tpu.pipeline_mode<synchronous>, transform_indices = @transform_0, window_bounds = array<i64: 8, 3>}, {transform_indices = @transform_1, window_bounds = array<i64: 3, 128>}, {pipeline_mode = #tpu.pipeline_mode<synchronous>, transform_indices = @transform_2, window_bounds = array<i64: 8, 8>}, {transform_indices = @transform_3, window_bounds = array<i64: 128, 1>}, {transform_indices = @transform_4, window_bounds = array<i64: 1, 8, 1>}]} {
    %c0_i32 = arith.constant 0 : i32
    %0 = arith.cmpi eq, %arg1, %c0_i32 : i32
    %1 = arith.extui %0 : i1 to i32
    %c0_i32_0 = arith.constant 0 : i32
    %2 = arith.cmpi ne, %1, %c0_i32_0 : i32
    scf.if %2 {
      %cst_17 = arith.constant 0.000000e+00 : f32
      %22 = vector.broadcast %cst_17 : f32 to vector<8x1xf32>
      %c0_18 = arith.constant 0 : index
      %c0_19 = arith.constant 0 : index
      %23 = vector.load %arg7[%c0_18, %c0_19] : memref<8x1xf32, #tpu.memory_space<vmem>>, vector<8x1xf32>
      tpu.vector_store %arg7[%c0_18, %c0_19], %22 {strides = array<i32>} : memref<8x1xf32, #tpu.memory_space<vmem>>, vector<8x1xf32>,
    } else {
    }
    %c0 = arith.constant 0 : index
    %c0_1 = arith.constant 0 : index
    %3 = vector.load %arg2[%c0, %c0_1] : memref<8x3xf32, #tpu.memory_space<vmem>>, vector<8x3xf32>
    %c0_2 = arith.constant 0 : index
    %c0_3 = arith.constant 0 : index
    %4 = vector.load %arg3[%c0_2, %c0_3] : memref<3x128xf32, #tpu.memory_space<vmem>>, vector<3x128xf32>
    %cst = arith.constant dense<0.000000e+00> : vector<8x128xf32>
    %5 = tpu.matmul %3, %4, %cst {dimension_numbers = #tpu.dot_dimension_numbers<[1], [0], [0], [1], [0, 0, 1, 1], [], []>, precision = #tpu.contract_precision<fp32>} : vector<8x3xf32>, vector<3x128xf32>, vector<8x128xf32> -> vector<8x128xf32>
    %6 = math.cos %5 : vector<8x128xf32>
    %7 = math.sin %5 : vector<8x128xf32>
    %c0_4 = arith.constant 0 : index
    %c0_5 = arith.constant 0 : index
    %8 = vector.load %arg4[%c0_4, %c0_5] : memref<8x8xf32, #tpu.memory_space<vmem>>, vector<8x8xf32>
    %cst_6 = arith.constant dense<0.000000e+00> : vector<8x128xf32>
    %9 = tpu.matmul %8, %6, %cst_6 {dimension_numbers = #tpu.dot_dimension_numbers<[1], [0], [0], [1], [0, 0, 1, 1], [], []>, precision = #tpu.contract_precision<fp32>} : vector<8x8xf32>, vector<8x128xf32>, vector<8x128xf32> -> vector<8x128xf32>
    %cst_7 = arith.constant dense<0.000000e+00> : vector<8x128xf32>
    %10 = tpu.matmul %8, %7, %cst_7 {dimension_numbers = #tpu.dot_dimension_numbers<[1], [0], [0], [1], [0, 0, 1, 1], [], []>, precision = #tpu.contract_precision<fp32>} : vector<8x8xf32>, vector<8x128xf32>, vector<8x128xf32> -> vector<8x128xf32>
    %11 = arith.mulf %9, %9 : vector<8x128xf32>
    %12 = arith.mulf %10, %10 : vector<8x128xf32>
    %13 = arith.addf %11, %12 : vector<8x128xf32>
    %c0_8 = arith.constant 0 : index
    %c0_9 = arith.constant 0 : index
    %14 = vector.load %arg7[%c0_8, %c0_9] : memref<8x1xf32, #tpu.memory_space<vmem>>, vector<8x1xf32>
    %c0_10 = arith.constant 0 : index
    %c0_11 = arith.constant 0 : index
    %15 = vector.load %arg5[%c0_10, %c0_11] : memref<128x1xf32, #tpu.memory_space<vmem>>, vector<128x1xf32>
    %cst_12 = arith.constant dense<0.000000e+00> : vector<8x1xf32>
    %16 = tpu.matmul %13, %15, %cst_12 {dimension_numbers = #tpu.dot_dimension_numbers<[1], [0], [0], [1], [0, 0, 1, 1], [], []>, precision = #tpu.contract_precision<fp32>} : vector<8x128xf32>, vector<128x1xf32>, vector<8x1xf32> -> vector<8x1xf32>
    %17 = arith.addf %14, %16 : vector<8x1xf32>
    %c0_13 = arith.constant 0 : index
    %c0_14 = arith.constant 0 : index
    %18 = vector.load %arg7[%c0_13, %c0_14] : memref<8x1xf32, #tpu.memory_space<vmem>>, vector<8x1xf32>
    tpu.vector_store %arg7[%c0_13, %c0_14], %17 {strides = array<i32>} : memref<8x1xf32, #tpu.memory_space<vmem>>, vector<8x1xf32>,
    %c0_i32_15 = arith.constant 0 : i32
    %19 = arith.cmpi eq, %arg1, %c0_i32_15 : i32
    %20 = arith.extui %19 : i1 to i32
    %c0_i32_16 = arith.constant 0 : i32
    %21 = arith.cmpi ne, %20, %c0_i32_16 : i32
    scf.if %21 {
      %c0_17 = arith.constant 0 : index
      %c0_18 = arith.constant 0 : index
      %22 = vector.load %arg7[%c0_17, %c0_18] : memref<8x1xf32, #tpu.memory_space<vmem>>, vector<8x1xf32>
      %23 = vector.shape_cast %22 : vector<8x1xf32> to vector<1x8x1xf32>
      %c0_19 = arith.constant 0 : index
      %c0_20 = arith.constant 0 : index
      %c0_21 = arith.constant 0 : index
      %24 = vector.load %arg6[%c0_19, %c0_20, %c0_21] : memref<1x8x1xf32, #tpu.memory_space<vmem>>, vector<1x8x1xf32>
      tpu.vector_store %arg6[%c0_19, %c0_20, %c0_21], %23 {strides = array<i32>} : memref<1x8x1xf32, #tpu.memory_space<vmem>>, vector<1x8x1xf32>,
    } else {
    }
    return
  }
  func.func @transform_0(%arg0: i32, %arg1: i32) -> (i32, i32) {
    %c0_i32 = arith.constant 0 : i32
    %c0_i32_0 = arith.constant 0 : i32
    %c0_i32_1 = arith.constant 0 : i32
    return %c0_i32, %c0_i32_0 : i32, i32
  }
  func.func @transform_1(%arg0: i32, %arg1: i32) -> (i32, i32) {
    %c1_i32 = arith.constant 1 : i32
    %0 = arith.muli %arg0, %c1_i32 : i32
    %1 = arith.addi %0, %arg1 : i32
    %c0_i32 = arith.constant 0 : i32
    %c0_i32_0 = arith.constant 0 : i32
    return %c0_i32, %1 : i32, i32
  }
  func.func @transform_2(%arg0: i32, %arg1: i32) -> (i32, i32) {
    %c0_i32 = arith.constant 0 : i32
    %c0_i32_0 = arith.constant 0 : i32
    %c0_i32_1 = arith.constant 0 : i32
    return %c0_i32, %c0_i32_0 : i32, i32
  }
  func.func @transform_3(%arg0: i32, %arg1: i32) -> (i32, i32) {
    %c1_i32 = arith.constant 1 : i32
    %0 = arith.muli %arg0, %c1_i32 : i32
    %1 = arith.addi %0, %arg1 : i32
    %c0_i32 = arith.constant 0 : i32
    %c0_i32_0 = arith.constant 0 : i32
    return %1, %c0_i32 : i32, i32
  }
  func.func @transform_4(%arg0: i32, %arg1: i32) -> (i32, i32, i32) {
    %c0_i32 = arith.constant 0 : i32
    %c0_i32_0 = arith.constant 0 : i32
    %c0_i32_1 = arith.constant 0 : i32
    return %arg0, %c0_i32, %c0_i32_0 : i32, i32, i32
  }
}

</mosaic_0001>

<llo_original>
// kernel: tpu_custom_call.1
$region0: #{tpu_custom_call.1}
  #allocation0 [shape = 'u32[]', space=smem, size = 0x4, offset = 0x4, fixed_abs, tag = 'smem constant byte address 0x4 - core index']
  #allocation1 [shape = 'u32[144,128]{1,0:T(1,128)}', space=vmem, size = 0x12000, scoped, tag = 'internal scratch']
  #allocation2 [shape = 'f32[8,1]{1,0:T(8,128)}', space=vmem, size = 0x1000, scoped, tag = 'scratch operand']
  %s0 = inlined_call_operand.vmem [shape: f32[8,3], index: 0, kind: input, shape index: {}]
  %s1 = inlined_call_operand.vmem [shape: f32[3,128], index: 1, kind: input, shape index: {}]
  %s2 = inlined_call_operand.vmem [shape: f32[8,8], index: 2, kind: input, shape index: {}]
  %s3 = inlined_call_operand.vmem [shape: f32[128,1], index: 3, kind: input, shape index: {}]
  %s4 = inlined_call_operand.vmem [shape: f32[1,8,1], index: 4, kind: output, shape index: {}]
  %s5 = sld [smem:[#allocation0]]
  $region34: #{tpu_custom_call.1} parent=0
    _
  %s7 = ssub.s32 1, %s5
  %s8 = scalar_select 0, %s7, %s5
  // Predicated region
  $region2: #{tpu_custom_call.1} parent=0 // pred_check
    _
  $region3: #{tpu_custom_call.1} parent=0 // pred_check_branch
    %10 = sbr.rel (0) target = $region5
  $region4: #{tpu_custom_call.1} parent=0 // pred_region
    _
  $region5: #{tpu_custom_call.1} parent=0 // pred_fallthru
    _
  // Predicated region
  $region6: #{tpu_custom_call.1} parent=0 // pred_check
    _
  $region7: #{tpu_custom_call.1} parent=0 // pred_check_branch
    %12 = sbr.rel (0) target = $region9
  $region8: #{tpu_custom_call.1} parent=0 // pred_region
    %s13 = sadd.s32 0, 0
    %p14 = scmp.lt.s32.totalorder %s13, 0
    %s15 = scalar_select %p14, %s13, 0
    %s16 = smul.addr %s15, 4
    %s17 = scalar_lea.vmem %s1, %s16
    %s18 = sadd.s32 0, 0
  $region9: #{tpu_custom_call.1} parent=0 // pred_fallthru
    _
  // Predicated region
  $region10: #{tpu_custom_call.1} parent=0 // pred_check
    _
  $region11: #{tpu_custom_call.1} parent=0 // pred_check_branch
    %20 = sbr.rel (0) target = $region13
  $region12: #{tpu_custom_call.1} parent=0 // pred_region
    _
  $region13: #{tpu_custom_call.1} parent=0 // pred_fallthru
    _
  // Predicated region
  $region14: #{tpu_custom_call.1} parent=0 // pred_check
    _
  $region15: #{tpu_custom_call.1} parent=0 // pred_check_branch
    %22 = sbr.rel (0) target = $region17
  $region16: #{tpu_custom_call.1} parent=0 // pred_region
    %s23 = sadd.s32 0, 0
    %s24 = smul.u32 16, %s23
    %p25 = scmp.lt.s32.totalorder %s24, 15
    %s26 = scalar_select %p25, %s24, 15
    %s27 = smul.addr %s26, 8
    %s28 = scalar_lea.vmem %s3, %s27
    %s29 = sadd.s32 0, 0
    %s30 = smul.u32 16, %s29
  $region17: #{tpu_custom_call.1} parent=0 // pred_fallthru
    _
  %s31 = sadd.s32 0, 0
  %p32 = scmp.lt.s32.totalorder %s31, 0
  %s33 = scalar_select %p32, %s31, 0
  %s34 = smul.addr %s33, 4
  %s35 = scalar_lea.vmem %s1, %s34
  %s36 = sadd.s32 0, 0
  %s37 = smul.u32 16, %s36
  %p38 = scmp.lt.s32.totalorder %s37, 15
  %s39 = scalar_select %p38, %s37, 15
  %s40 = smul.addr %s39, 8
  %s41 = scalar_lea.vmem %s3, %s40
  %s42 = sadd.s32 0, 0
  %p43 = scmp.lt.s32.totalorder %s42, 0
  %s44 = scalar_select %p43, %s42, 0
  %s45 = smul.addr %s44, 4
  %s46 = scalar_lea.vmem %s1, %s45
  %s47 = sadd.s32 0, 0
  %s48 = sadd.s32 0, 0
  %s49 = smul.u32 16, %s48
  %p50 = scmp.lt.s32.totalorder %s49, 15
  %s51 = scalar_select %p50, %s49, 15
  %s52 = smul.addr %s51, 8
  %s53 = scalar_lea.vmem %s3, %s52
  %s54 = sadd.s32 0, 0
  %s55 = smul.u32 16, %s54
  %p56 = scmp.eq.s32.totalorder 0, 0
  // Predicated region
  $region18: #{tpu_custom_call.1} parent=0 // pred_check
    %p57 = pneg %p56
  $region19: #{tpu_custom_call.1} parent=0 // pred_check_branch
    %59 = sbr.rel (%p57) target = $region21
  $region20: #{tpu_custom_call.1} parent=0 // pred_region
    %vm60 = vcmask 7168
    %61 = vst.msk [vmem:[#allocation2] sm:$0xff] %vm60, 0.0
  $region21: #{tpu_custom_call.1} parent=0 // pred_fallthru
    _
  %v62 = vld [vmem:[%s0] sm:$0xff]
  %v63 = vld [vmem:[%s46] sm:$0x7]
  %vm64 = vcmask 23552
  %v66 = vsel %vm64, %v62, 0
  %vm68 = vcmask 1042432
  %v70 = vsel %vm68, %v63, 0
  %72 = vmatprep.subr.mxu0 0.0
  %v73 = vand.u32 %v70, 4294901760
  %74 = vmatpush1.msra.mxu0 %v73
  %75 = vmatprep.subr.mxu0 0.0
  %76 = vmatpush1.msra.mxu0 0.0
  %77 = vmatprep.subr.mxu0 0.0
  %78 = vmatpush1.msra.mxu0 0.0
  %79 = vmatprep.subr.mxu0 0.0
  %80 = vmatpush1.msra.mxu0 0.0
  %81 = vmatprep.subr.mxu0 0.0
  %82 = vmatpush1.msra.mxu0 0.0
  %83 = vmatprep.subr.mxu0 0.0
  %84 = vmatpush1.msra.mxu0 0.0
  %85 = vmatprep.subr.mxu0 0.0
  %86 = vmatpush1.msra.mxu0 0.0
  %87 = vmatprep.subr.mxu0 0.0
  %88 = vmatpush1.msra.mxu0 0.0
  %89 = vmatprep.subr.mxu0 0.0
  %90 = vmatpush1.msra.mxu0 0.0
  %91 = vmatprep.subr.mxu0 0.0
  %92 = vmatpush1.msra.mxu0 0.0
  %93 = vmatprep.subr.mxu0 0.0
  %94 = vmatpush1.msra.mxu0 0.0
  %95 = vmatprep.subr.mxu0 0.0
  %96 = vmatpush1.msra.mxu0 0.0
  %97 = vmatprep.subr.mxu0 0.0
  %98 = vmatpush1.msra.mxu0 0.0
  %99 = vmatprep.subr.mxu0 0.0
  %100 = vmatpush1.msra.mxu0 0.0
  %101 = vmatprep.subr.mxu0 0.0
  %102 = vmatpush1.msra.mxu0 0.0
  %103 = vmatprep.subr.mxu0 0.0
  %104 = vmatpush1.msra.mxu0 0.0
  %105 = vmatprep.subr.mxu0 0.0
  %106 = vmatpush1.msra.mxu0 0.0
  %107 = vmatprep.subr.mxu0 0.0
  %108 = vmatpush1.msra.mxu0 0.0
  %109 = vmatprep.subr.mxu0 0.0
  %110 = vmatpush1.msra.mxu0 0.0
  %111 = vmatprep.subr.mxu0 0.0
  %112 = vmatpush1.msra.mxu0 0.0
  %113 = vmatprep.subr.mxu0 0.0
  %114 = vmatpush1.msra.mxu0 0.0
  %115 = vmatprep.subr.mxu0 0.0
  %116 = vmatpush1.msra.mxu0 0.0
  %117 = vmatprep.subr.mxu0 0.0
  %118 = vmatpush1.msra.mxu0 0.0
  %119 = vmatprep.subr.mxu0 0.0
  %120 = vmatpush1.msra.mxu0 0.0
  %121 = vmatprep.subr.mxu0 0.0
  %122 = vmatpush1.msra.mxu0 0.0
  %123 = vmatprep.subr.mxu0 0.0
  %124 = vmatpush1.msra.mxu0 0.0
  %125 = vmatprep.subr.mxu0 0.0
  %126 = vmatpush1.msra.mxu0 0.0
  %127 = vmatprep.subr.mxu0 0.0
  %128 = vmatpush1.msra.mxu0 0.0
  %129 = vmatprep.subr.mxu0 0.0
  %130 = vmatpush1.msra.mxu0 0.0
  %131 = vmatprep.subr.mxu0 0.0
  %132 = vmatpush1.msra.mxu0 0.0
  %133 = vmatprep.subr.mxu0 0.0
  %134 = vmatpush1.msra.mxu0 0.0
  %135 = vmatprep.subr.mxu0 0.0
  %136 = vmatpush1.msra.mxu0 0.0
  %137 = vmatprep.mubr.f32.mxu0 0.0
  %v138 = vand.u32 %v66, 4294901760
  %v139 = vsub.f32 %v66, %v138
  %v140 = vand.u32 %v139, 4294901760
  %v141 = vsub.f32 %v139, %v140
  %v142 = vand.u32 %v141, 4294901760
  %143 = vmatmul.mubr.f32.gmra.mrb[0].mxu0 %v142
  %v144 = vpop.f32.mrb[0].mxu0
  %v145 = vadd.f32 0.0, %v144
  %v146 = vpop.f32.mrb[0].mxu0
  %147 = vdwg.mxu0
  %148 = vmatprep.subr.mxu0 0.0
  %v149 = vand.u32 %v70, 4294901760
  %v150 = vsub.f32 %v70, %v149
  %v151 = vand.u32 %v150, 4294901760
  %v152 = vsub.f32 %v150, %v151
  %v153 = vand.u32 %v152, 4294901760
  %154 = vmatpush1.msra.mxu0 %v153
  %155 = vmatprep.subr.mxu0 0.0
  %156 = vmatpush1.msra.mxu0 0.0
  %157 = vmatprep.subr.mxu0 0.0
  %158 = vmatpush1.msra.mxu0 0.0
  %159 = vmatprep.subr.mxu0 0.0
  %160 = vmatpush1.msra.mxu0 0.0
  %161 = vmatprep.subr.mxu0 0.0
  %162 = vmatpush1.msra.mxu0 0.0
  %163 = vmatprep.subr.mxu0 0.0
  %164 = vmatpush1.msra.mxu0 0.0
  %165 = vmatprep.subr.mxu0 0.0
  %166 = vmatpush1.msra.mxu0 0.0
  %167 = vmatprep.subr.mxu0 0.0
  %168 = vmatpush1.msra.mxu0 0.0
  %169 = vmatprep.subr.mxu0 0.0
  %170 = vmatpush1.msra.mxu0 0.0
  %171 = vmatprep.subr.mxu0 0.0
  %172 = vmatpush1.msra.mxu0 0.0
  %173 = vmatprep.subr.mxu0 0.0
  %174 = vmatpush1.msra.mxu0 0.0
  %175 = vmatprep.subr.mxu0 0.0
  %176 = vmatpush1.msra.mxu0 0.0
  %177 = vmatprep.subr.mxu0 0.0
  %178 = vmatpush1.msra.mxu0 0.0
  %179 = vmatprep.subr.mxu0 0.0
  %180 = vmatpush1.msra.mxu0 0.0
  %181 = vmatprep.subr.mxu0 0.0
  %182 = vmatpush1.msra.mxu0 0.0
  %183 = vmatprep.subr.mxu0 0.0
  %184 = vmatpush1.msra.mxu0 0.0
  %185 = vmatprep.subr.mxu0 0.0
  %186 = vmatpush1.msra.mxu0 0.0
  %187 = vmatprep.subr.mxu0 0.0
  %188 = vmatpush1.msra.mxu0 0.0
  %189 = vmatprep.subr.mxu0 0.0
  %190 = vmatpush1.msra.mxu0 0.0
  %191 = vmatprep.subr.mxu0 0.0
  %192 = vmatpush1.msra.mxu0 0.0
  %193 = vmatprep.subr.mxu0 0.0
  %194 = vmatpush1.msra.mxu0 0.0
  %195 = vmatprep.subr.mxu0 0.0
  %196 = vmatpush1.msra.mxu0 0.0
  %197 = vmatprep.subr.mxu0 0.0
  %198 = vmatpush1.msra.mxu0 0.0
  %199 = vmatprep.subr.mxu0 0.0
  %200 = vmatpush1.msra.mxu0 0.0
  %201 = vmatprep.subr.mxu0 0.0
  %202 = vmatpush1.msra.mxu0 0.0
  %203 = vmatprep.subr.mxu0 0.0
  %204 = vmatpush1.msra.mxu0 0.0
  %205 = vmatprep.subr.mxu0 0.0
  %206 = vmatpush1.msra.mxu0 0.0
  %207 = vmatprep.subr.mxu0 0.0
  %208 = vmatpush1.msra.mxu0 0.0
  %209 = vmatprep.subr.mxu0 0.0
  %210 = vmatpush1.msra.mxu0 0.0
  %211 = vmatprep.subr.mxu0 0.0
  %212 = vmatpush1.msra.mxu0 0.0
  %213 = vmatprep.subr.mxu0 0.0
  %214 = vmatpush1.msra.mxu0 0.0
  %215 = vmatprep.subr.mxu0 0.0
  %216 = vmatpush1.msra.mxu0 0.0
  %217 = vmatprep.mubr.f32.mxu0 0.0
  %v218 = vand.u32 %v66, 4294901760
  %219 = vmatmul.mubr.f32.gmra.mrb[0].mxu0 %v218
  %v220 = vpop.f32.mrb[0].mxu0
  %v221 = vadd.f32 %v145, %v220
  %v222 = vpop.f32.mrb[0].mxu0
  %223 = vdwg.mxu0
  %224 = vmatprep.subr.mxu0 0.0
  %v225 = vand.u32 %v70, 4294901760
  %v226 = vsub.f32 %v70, %v225
  %227 = vmatpush1.msra.mxu0 %v226
  %228 = vmatprep.subr.mxu0 0.0
  %229 = vmatpush1.msra.mxu0 0.0
  %230 = vmatprep.subr.mxu0 0.0
  %231 = vmatpush1.msra.mxu0 0.0
  %232 = vmatprep.subr.mxu0 0.0
  %233 = vmatpush1.msra.mxu0 0.0
  %234 = vmatprep.subr.mxu0 0.0
  %235 = vmatpush1.msra.mxu0 0.0
  %236 = vmatprep.subr.mxu0 0.0
  %237 = vmatpush1.msra.mxu0 0.0
  %238 = vmatprep.subr.mxu0 0.0
  %239 = vmatpush1.msra.mxu0 0.0
  %240 = vmatprep.subr.mxu0 0.0
  %241 = vmatpush1.msra.mxu0 0.0
  %242 = vmatprep.subr.mxu0 0.0
  %243 = vmatpush1.msra.mxu0 0.0
  %244 = vmatprep.subr.mxu0 0.0
  %245 = vmatpush1.msra.mxu0 0.0
  %246 = vmatprep.subr.mxu0 0.0
  %247 = vmatpush1.msra.mxu0 0.0
  %248 = vmatprep.subr.mxu0 0.0
  %249 = vmatpush1.msra.mxu0 0.0
  %250 = vmatprep.subr.mxu0 0.0
  %251 = vmatpush1.msra.mxu0 0.0
  %252 = vmatprep.subr.mxu0 0.0
  %253 = vmatpush1.msra.mxu0 0.0
  %254 = vmatprep.subr.mxu0 0.0
  %255 = vmatpush1.msra.mxu0 0.0
  %256 = vmatprep.subr.mxu0 0.0
  %257 = vmatpush1.msra.mxu0 0.0
  %258 = vmatprep.subr.mxu0 0.0
  %259 = vmatpush1.msra.mxu0 0.0
  %260 = vmatprep.subr.mxu0 0.0
  %261 = vmatpush1.msra.mxu0 0.0
  %262 = vmatprep.subr.mxu0 0.0
  %263 = vmatpush1.msra.mxu0 0.0
  %264 = vmatprep.subr.mxu0 0.0
  %265 = vmatpush1.msra.mxu0 0.0
  %266 = vmatprep.subr.mxu0 0.0
  %267 = vmatpush1.msra.mxu0 0.0
  %268 = vmatprep.subr.mxu0 0.0
  %269 = vmatpush1.msra.mxu0 0.0
  %270 = vmatprep.subr.mxu0 0.0
  %271 = vmatpush1.msra.mxu0 0.0
  %272 = vmatprep.subr.mxu0 0.0
  %273 = vmatpush1.msra.mxu0 0.0
  %274 = vmatprep.subr.mxu0 0.0
  %275 = vmatpush1.msra.mxu0 0.0
  %276 = vmatprep.subr.mxu0 0.0
  %277 = vmatpush1.msra.mxu0 0.0
  %278 = vmatprep.subr.mxu0 0.0
  %279 = vmatpush1.msra.mxu0 0.0
  %280 = vmatprep.subr.mxu0 0.0
  %281 = vmatpush1.msra.mxu0 0.0
  %282 = vmatprep.subr.mxu0 0.0
  %283 = vmatpush1.msra.mxu0 0.0
  %284 = vmatprep.subr.mxu0 0.0
  %285 = vmatpush1.msra.mxu0 0.0
  %286 = vmatprep.subr.mxu0 0.0
  %287 = vmatpush1.msra.mxu0 0.0
  %288 = vmatprep.subr.mxu0 0.0
  %289 = vmatpush1.msra.mxu0 0.0
  %290 = vmatprep.mubr.f32.mxu0 0.0
  %v291 = vand.u32 %v66, 4294901760
  %v292 = vsub.f32 %v66, %v291
  %293 = vmatmul.mubr.f32.gmra.mrb[0].mxu0 %v292
  %v294 = vpop.f32.mrb[0].mxu0
  %v295 = vadd.f32 %v221, %v294
  %v296 = vpop.f32.mrb[0].mxu0
  %297 = vdwg.mxu0
  %298 = vmatprep.subr.mxu0 0.0
  %v299 = vand.u32 %v70, 4294901760
  %300 = vmatpush1.msra.mxu0 %v299
  %301 = vmatprep.subr.mxu0 0.0
  %302 = vmatpush1.msra.mxu0 0.0
  %303 = vmatprep.subr.mxu0 0.0
  %304 = vmatpush1.msra.mxu0 0.0
  %305 = vmatprep.subr.mxu0 0.0
  %306 = vmatpush1.msra.mxu0 0.0
  %307 = vmatprep.subr.mxu0 0.0
  %308 = vmatpush1.msra.mxu0 0.0
  %309 = vmatprep.subr.mxu0 0.0
  %310 = vmatpush1.msra.mxu0 0.0
  %311 = vmatprep.subr.mxu0 0.0
  %312 = vmatpush1.msra.mxu0 0.0
  %313 = vmatprep.subr.mxu0 0.0
  %314 = vmatpush1.msra.mxu0 0.0
  %315 = vmatprep.subr.mxu0 0.0
  %316 = vmatpush1.msra.mxu0 0.0
  %317 = vmatprep.subr.mxu0 0.0
  %318 = vmatpush1.msra.mxu0 0.0
  %319 = vmatprep.subr.mxu0 0.0
  %320 = vmatpush1.msra.mxu0 0.0
  %321 = vmatprep.subr.mxu0 0.0
  %322 = vmatpush1.msra.mxu0 0.0
  %323 = vmatprep.subr.mxu0 0.0
  %324 = vmatpush1.msra.mxu0 0.0
  %325 = vmatprep.subr.mxu0 0.0
  %326 = vmatpush1.msra.mxu0 0.0
  %327 = vmatprep.subr.mxu0 0.0
  %328 = vmatpush1.msra.mxu0 0.0
  %329 = vmatprep.subr.mxu0 0.0
  %330 = vmatpush1.msra.mxu0 0.0
  %331 = vmatprep.subr.mxu0 0.0
  %332 = vmatpush1.msra.mxu0 0.0
  %333 = vmatprep.subr.mxu0 0.0
  %334 = vmatpush1.msra.mxu0 0.0
  %335 = vmatprep.subr.mxu0 0.0
  %336 = vmatpush1.msra.mxu0 0.0
  %337 = vmatprep.subr.mxu0 0.0
  %338 = vmatpush1.msra.mxu0 0.0
  %339 = vmatprep.subr.mxu0 0.0
  %340 = vmatpush1.msra.mxu0 0.0
  %341 = vmatprep.subr.mxu0 0.0
  %342 = vmatpush1.msra.mxu0 0.0
  %343 = vmatprep.subr.mxu0 0.0
  %344 = vmatpush1.msra.mxu0 0.0
  %345 = vmatprep.subr.mxu0 0.0
  %346 = vmatpush1.msra.mxu0 0.0
  %347 = vmatprep.subr.mxu0 0.0
  %348 = vmatpush1.msra.mxu0 0.0
  %349 = vmatprep.subr.mxu0 0.0
  %350 = vmatpush1.msra.mxu0 0.0
  %351 = vmatprep.subr.mxu0 0.0
  %352 = vmatpush1.msra.mxu0 0.0
  %353 = vmatprep.subr.mxu0 0.0
  %354 = vmatpush1.msra.mxu0 0.0
  %355 = vmatprep.subr.mxu0 0.0
  %356 = vmatpush1.msra.mxu0 0.0
  %357 = vmatprep.subr.mxu0 0.0
  %358 = vmatpush1.msra.mxu0 0.0
  %359 = vmatprep.subr.mxu0 0.0
  %360 = vmatpush1.msra.mxu0 0.0
  %361 = vmatprep.subr.mxu0 0.0
  %362 = vmatpush1.msra.mxu0 0.0
  %363 = vmatprep.mubr.f32.mxu0 0.0
  %v364 = vand.u32 %v66, 4294901760
  %v365 = vsub.f32 %v66, %v364
  %v366 = vand.u32 %v365, 4294901760
  %367 = vmatmul.mubr.f32.gmra.mrb[0].mxu0 %v366
  %v368 = vpop.f32.mrb[0].mxu0
  %v369 = vadd.f32 %v295, %v368
  %v370 = vpop.f32.mrb[0].mxu0
  %371 = vdwg.mxu0
  %372 = vmatprep.subr.mxu0 0.0
  %v373 = vand.u32 %v70, 4294901760
  %v374 = vsub.f32 %v70, %v373
  %v375 = vand.u32 %v374, 4294901760
  %376 = vmatpush1.msra.mxu0 %v375
  %377 = vmatprep.subr.mxu0 0.0
  %378 = vmatpush1.msra.mxu0 0.0
  %379 = vmatprep.subr.mxu0 0.0
  %380 = vmatpush1.msra.mxu0 0.0
  %381 = vmatprep.subr.mxu0 0.0
  %382 = vmatpush1.msra.mxu0 0.0
  %383 = vmatprep.subr.mxu0 0.0
  %384 = vmatpush1.msra.mxu0 0.0
  %385 = vmatprep.subr.mxu0 0.0
  %386 = vmatpush1.msra.mxu0 0.0
  %387 = vmatprep.subr.mxu0 0.0
  %388 = vmatpush1.msra.mxu0 0.0
  %389 = vmatprep.subr.mxu0 0.0
  %390 = vmatpush1.msra.mxu0 0.0
  %391 = vmatprep.subr.mxu0 0.0
  %392 = vmatpush1.msra.mxu0 0.0
  %393 = vmatprep.subr.mxu0 0.0
  %394 = vmatpush1.msra.mxu0 0.0
  %395 = vmatprep.subr.mxu0 0.0
  %396 = vmatpush1.msra.mxu0 0.0
  %397 = vmatprep.subr.mxu0 0.0
  %398 = vmatpush1.msra.mxu0 0.0
  %399 = vmatprep.subr.mxu0 0.0
  %400 = vmatpush1.msra.mxu0 0.0
  %401 = vmatprep.subr.mxu0 0.0
  %402 = vmatpush1.msra.mxu0 0.0
  %403 = vmatprep.subr.mxu0 0.0
  %404 = vmatpush1.msra.mxu0 0.0
  %405 = vmatprep.subr.mxu0 0.0
  %406 = vmatpush1.msra.mxu0 0.0
  %407 = vmatprep.subr.mxu0 0.0
  %408 = vmatpush1.msra.mxu0 0.0
  %409 = vmatprep.subr.mxu0 0.0
  %410 = vmatpush1.msra.mxu0 0.0
  %411 = vmatprep.subr.mxu0 0.0
  %412 = vmatpush1.msra.mxu0 0.0
  %413 = vmatprep.subr.mxu0 0.0
  %414 = vmatpush1.msra.mxu0 0.0
  %415 = vmatprep.subr.mxu0 0.0
  %416 = vmatpush1.msra.mxu0 0.0
  %417 = vmatprep.subr.mxu0 0.0
  %418 = vmatpush1.msra.mxu0 0.0
  %419 = vmatprep.subr.mxu0 0.0
  %420 = vmatpush1.msra.mxu0 0.0
  %421 = vmatprep.subr.mxu0 0.0
  %422 = vmatpush1.msra.mxu0 0.0
  %423 = vmatprep.subr.mxu0 0.0
  %424 = vmatpush1.msra.mxu0 0.0
  %425 = vmatprep.subr.mxu0 0.0
  %426 = vmatpush1.msra.mxu0 0.0
  %427 = vmatprep.subr.mxu0 0.0
  %428 = vmatpush1.msra.mxu0 0.0
  %429 = vmatprep.subr.mxu0 0.0
  %430 = vmatpush1.msra.mxu0 0.0
  %431 = vmatprep.subr.mxu0 0.0
  %432 = vmatpush1.msra.mxu0 0.0
  %433 = vmatprep.subr.mxu0 0.0
  %434 = vmatpush1.msra.mxu0 0.0
  %435 = vmatprep.subr.mxu0 0.0
  %436 = vmatpush1.msra.mxu0 0.0
  %437 = vmatprep.subr.mxu0 0.0
  %438 = vmatpush1.msra.mxu0 0.0
  %439 = vmatprep.mubr.f32.mxu0 0.0
  %v440 = vand.u32 %v66, 4294901760
  %441 = vmatmul.mubr.f32.gmra.mrb[0].mxu0 %v440
  %v442 = vpop.f32.mrb[0].mxu0
  %v443 = vadd.f32 %v369, %v442
  %v444 = vpop.f32.mrb[0].mxu0
  %445 = vdwg.mxu0
  %446 = vmatprep.subr.mxu0 0.0
  %v447 = vand.u32 %v70, 4294901760
  %448 = vmatpush1.msra.mxu0 %v447
  %449 = vmatprep.subr.mxu0 0.0
  %450 = vmatpush1.msra.mxu0 0.0
  %451 = vmatprep.subr.mxu0 0.0
  %452 = vmatpush1.msra.mxu0 0.0
  %453 = vmatprep.subr.mxu0 0.0
  %454 = vmatpush1.msra.mxu0 0.0
  %455 = vmatprep.subr.mxu0 0.0
  %456 = vmatpush1.msra.mxu0 0.0
  %457 = vmatprep.subr.mxu0 0.0
  %458 = vmatpush1.msra.mxu0 0.0
  %459 = vmatprep.subr.mxu0 0.0
  %460 = vmatpush1.msra.mxu0 0.0
  %461 = vmatprep.subr.mxu0 0.0
  %462 = vmatpush1.msra.mxu0 0.0
  %463 = vmatprep.subr.mxu0 0.0
  %464 = vmatpush1.msra.mxu0 0.0
  %465 = vmatprep.subr.mxu0 0.0
  %466 = vmatpush1.msra.mxu0 0.0
  %467 = vmatprep.subr.mxu0 0.0
  %468 = vmatpush1.msra.mxu0 0.0
  %469 = vmatprep.subr.mxu0 0.0
  %470 = vmatpush1.msra.mxu0 0.0
  %471 = vmatprep.subr.mxu0 0.0
  %472 = vmatpush1.msra.mxu0 0.0
  %473 = vmatprep.subr.mxu0 0.0
  %474 = vmatpush1.msra.mxu0 0.0
  %475 = vmatprep.subr.mxu0 0.0
  %476 = vmatpush1.msra.mxu0 0.0
  %477 = vmatprep.subr.mxu0 0.0
  %478 = vmatpush1.msra.mxu0 0.0
  %479 = vmatprep.subr.mxu0 0.0
  %480 = vmatpush1.msra.mxu0 0.0
  %481 = vmatprep.subr.mxu0 0.0
  %482 = vmatpush1.msra.mxu0 0.0
  %483 = vmatprep.subr.mxu0 0.0
  %484 = vmatpush1.msra.mxu0 0.0
  %485 = vmatprep.subr.mxu0 0.0
  %486 = vmatpush1.msra.mxu0 0.0
  %487 = vmatprep.subr.mxu0 0.0
  %488 = vmatpush1.msra.mxu0 0.0
  %489 = vmatprep.subr.mxu0 0.0
  %490 = vmatpush1.msra.mxu0 0.0
  %491 = vmatprep.subr.mxu0 0.0
  %492 = vmatpush1.msra.mxu0 0.0
  %493 = vmatprep.subr.mxu0 0.0
  %494 = vmatpush1.msra.mxu0 0.0
  %495 = vmatprep.subr.mxu0 0.0
  %496 = vmatpush1.msra.mxu0 0.0
  %497 = vmatprep.subr.mxu0 0.0
  %498 = vmatpush1.msra.mxu0 0.0
  %499 = vmatprep.subr.mxu0 0.0
  %500 = vmatpush1.msra.mxu0 0.0
  %501 = vmatprep.subr.mxu0 0.0
  %502 = vmatpush1.msra.mxu0 0.0
  %503 = vmatprep.subr.mxu0 0.0
  %504 = vmatpush1.msra.mxu0 0.0
  %505 = vmatprep.subr.mxu0 0.0
  %506 = vmatpush1.msra.mxu0 0.0
  %507 = vmatprep.subr.mxu0 0.0
  %508 = vmatpush1.msra.mxu0 0.0
  %509 = vmatprep.subr.mxu0 0.0
  %510 = vmatpush1.msra.mxu0 0.0
  %511 = vmatprep.mubr.f32.mxu0 0.0
  %v512 = vand.u32 %v66, 4294901760
  %513 = vmatmul.mubr.f32.gmra.mrb[0].mxu0 %v512
  %v514 = vpop.f32.mrb[0].mxu0
  %v515 = vadd.f32 %v443, %v514
  %v516 = vpop.f32.mrb[0].mxu0
  %517 = vdwg.mxu0
  %v518 = vand.u32 2147483647, %v515
  %vm519 = vcmp.le.f32.partialorder %v518, 0.7853982
  %vm520 = vcmp.lt.s32.totalorder %v515, 0
  %v521 = vand.u32 %v515, 2139095040
  %v522 = vshrl.u32 %v521, 23
  %v523 = vsub.s32 %v522, 127
  %v524 = vand.u32 2147483647, %v515
  %v525 = vand.u32 %v524, 8388607
  %v526 = vor.u32 %v525, 8388608
  %v527 = vsub.s32 0, %v526
  %v528 = vadd.s32 %v523, 1
  %vm529 = vcmp.gt.s32.totalorder %v528, 0
  %v530 = vsel %vm529, %v528, 0
  %v531 = vshrl.u32 %v530, 5
  %v532 = vand.u32 %v530, 31
  %v533 = vsub.s32 32, %v532
  %v534 = vshrl.u32 683565275, %v533
  %v535 = vshll.u32 683565275, %v532
  %v536 = vshrl.u32 2475754826, %v533
  %v537 = vor.u32 %v535, %v536
  %v538 = vshll.u32 2475754826, %v532
  %v539 = vshrl.u32 2131351028, %v533
  %v540 = vor.u32 %v538, %v539
  %v541 = vshll.u32 2131351028, %v532
  %v542 = vshrl.u32 2102212464, %v533
  %v543 = vor.u32 %v541, %v542
  %v544 = vshll.u32 2102212464, %v532
  %v545 = vshrl.u32 920167782, %v533
  %v546 = vor.u32 %v544, %v545
  %v547 = vshll.u32 920167782, %v532
  %v548 = vshrl.u32 1326507024, %v533
  %v549 = vor.u32 %v547, %v548
  %vm550 = vcmp.lt.s32.totalorder %v531, 1
  %vm551 = vcmp.lt.s32.totalorder %v531, 2
  %vm552 = vcmp.lt.s32.totalorder %v531, 3
  %vm553 = vcmp.lt.s32.totalorder %v531, 4
  %v554 = vsel %vm550, %v534, %v537
  %v555 = vsel %vm553, %v543, 2102212464
  %v556 = vsel %vm552, %v540, %v555
  %v557 = vsel %vm551, %v554, %v556
  %v558 = vsel %vm550, %v537, %v540
  %v559 = vsel %vm553, %v546, 920167782
  %v560 = vsel %vm552, %v543, %v559
  %v561 = vsel %vm551, %v558, %v560
  %v562 = vsel %vm550, %v540, %v543
  %v563 = vsel %vm553, %v549, 1326507024
  %v564 = vsel %vm552, %v546, %v563
  %v565 = vsel %vm551, %v562, %v564
  %v566 = vshll.u32 %v526, 8
  %v567 = vmul.u32.u64.compose %v566, %v565
  %v568 = vextract.low.u32 %v567
  %v569 = vextract.high.u32 %v567
  %v570 = vmul.u32.u64.compose %v566, %v561
  %v571 = vextract.low.u32 %v570
  %v572 = vextract.high.u32 %v570
  %v573 = vmul.u32 %v566, %v557
  %v574 = vadd.s32 %v569, %v571
  %vm575 = vc.u32 %v569, %v571
  %v576 = vadd.s32 %v572, 1
  %v577 = vsel %vm575, %v576, %v572
  %v578 = vadd.s32 %v573, %v577
  %v579 = vadd.s32 %v578, 536870912
  %v580 = vshrl.u32 %v579, 30
  %v581 = vshll.u32 %v580, 30
  %v582 = vsub.s32 %v578, %v581
  %vm583 = vcmp.lt.s32.totalorder %v582, 0
  %v584 = vsub.s32 0, %v582
  %v585 = vsel %vm583, %v584, %v582
  %v586 = vclz %v585
  %v587 = vsub.s32 %v586, 2
  %vm588 = vcmp.gt.s32.totalorder 0, %v587
  %v589 = vsel %vm588, 0, %v587
  %v590 = vsub.s32 32, %v589
  %v591 = vshll.u32 %v582, %v589
  %v592 = vshrl.u32 %v574, %v590
  %v593 = vor.u32 %v591, %v592
  %v594 = vsub.s32 4294967266, %v589
  %v595 = vadd.s32 %v594, 127
  %v596 = vshll.u32 %v595, 23
  %v597 = vor.u32 4788187, %v596
  %v598 = vand.u32 2147483647, %v597
  %v600 = vcvt.s32.f32 %v593
  %v601 = vmul.f32 %v600, %v598
  %v602 = vxor.u32 %v601, 2147483648
  %v603 = vsel %vm520, %v602, %v601
  %v604 = vsub.s32 4, %v580
  %v605 = vsel %vm520, %v604, %v580
  %v606 = vsel %vm519, %v515, %v603
  %v607 = vsel %vm519, 0, %v605
  %v608 = vcosq.f32.pop %v606
  %v609 = vsinq.f32.pop %v606
  %vm610 = vweird.f32 %v515
  %v611 = vand.u32 %v607, 3
  %vm612 = vcmp.lt.s32.totalorder %v611, 2
  %vm613 = vcmp.eq.s32.totalorder %v611, 0
  %v614 = vxor.u32 %v609, 2147483648
  %v615 = vsel %vm613, %v608, %v614
  %vm616 = vcmp.eq.s32.totalorder %v611, 2
  %v617 = vxor.u32 %v608, 2147483648
  %v618 = vsel %vm616, %v617, %v609
  %v619 = vsel %vm612, %v615, %v618
  %v620 = vsel %vm610, nan, %v619
  %v621 = vand.u32 2147483647, %v515
  %vm622 = vcmp.le.f32.partialorder %v621, 0.7853982
  %vm623 = vcmp.lt.s32.totalorder %v515, 0
  %v624 = vand.u32 %v515, 2139095040
  %v625 = vshrl.u32 %v624, 23
  %v626 = vsub.s32 %v625, 127
  %v627 = vand.u32 2147483647, %v515
  %v628 = vand.u32 %v627, 8388607
  %v629 = vor.u32 %v628, 8388608
  %v630 = vsub.s32 0, %v629
  %v631 = vadd.s32 %v626, 1
  %vm632 = vcmp.gt.s32.totalorder %v631, 0
  %v633 = vsel %vm632, %v631, 0
  %v634 = vshrl.u32 %v633, 5
  %v635 = vand.u32 %v633, 31
  %v636 = vsub.s32 32, %v635
  %v637 = vshrl.u32 683565275, %v636
  %v638 = vshll.u32 683565275, %v635
  %v639 = vshrl.u32 2475754826, %v636
  %v640 = vor.u32 %v638, %v639
  %v641 = vshll.u32 2475754826, %v635
  %v642 = vshrl.u32 2131351028, %v636
  %v643 = vor.u32 %v641, %v642
  %v644 = vshll.u32 2131351028, %v635
  %v645 = vshrl.u32 2102212464, %v636
  %v646 = vor.u32 %v644, %v645
  %v647 = vshll.u32 2102212464, %v635
  %v648 = vshrl.u32 920167782, %v636
  %v649 = vor.u32 %v647, %v648
  %v650 = vshll.u32 920167782, %v635
  %v651 = vshrl.u32 1326507024, %v636
  %v652 = vor.u32 %v650, %v651
  %vm653 = vcmp.lt.s32.totalorder %v634, 1
  %vm654 = vcmp.lt.s32.totalorder %v634, 2
  %vm655 = vcmp.lt.s32.totalorder %v634, 3
  %vm656 = vcmp.lt.s32.totalorder %v634, 4
  %v657 = vsel %vm653, %v637, %v640
  %v658 = vsel %vm656, %v646, 2102212464
  %v659 = vsel %vm655, %v643, %v658
  %v660 = vsel %vm654, %v657, %v659
  %v661 = vsel %vm653, %v640, %v643
  %v662 = vsel %vm656, %v649, 920167782
  %v663 = vsel %vm655, %v646, %v662
  %v664 = vsel %vm654, %v661, %v663
  %v665 = vsel %vm653, %v643, %v646
  %v666 = vsel %vm656, %v652, 1326507024
  %v667 = vsel %vm655, %v649, %v666
  %v668 = vsel %vm654, %v665, %v667
  %v669 = vshll.u32 %v629, 8
  %v670 = vmul.u32.u64.compose %v669, %v668
  %v671 = vextract.low.u32 %v670
  %v672 = vextract.high.u32 %v670
  %v673 = vmul.u32.u64.compose %v669, %v664
  %v674 = vextract.low.u32 %v673
  %v675 = vextract.high.u32 %v673
  %v676 = vmul.u32 %v669, %v660
  %v677 = vadd.s32 %v672, %v674
  %vm678 = vc.u32 %v672, %v674
  %v679 = vadd.s32 %v675, 1
  %v680 = vsel %vm678, %v679, %v675
  %v681 = vadd.s32 %v676, %v680
  %v682 = vadd.s32 %v681, 536870912
  %v683 = vshrl.u32 %v682, 30
  %v684 = vshll.u32 %v683, 30
  %v685 = vsub.s32 %v681, %v684
  %vm686 = vcmp.lt.s32.totalorder %v685, 0
  %v687 = vsub.s32 0, %v685
  %v688 = vsel %vm686, %v687, %v685
  %v689 = vclz %v688
  %v690 = vsub.s32 %v689, 2
  %vm691 = vcmp.gt.s32.totalorder 0, %v690
  %v692 = vsel %vm691, 0, %v690
  %v693 = vsub.s32 32, %v692
  %v694 = vshll.u32 %v685, %v692
  %v695 = vshrl.u32 %v677, %v693
  %v696 = vor.u32 %v694, %v695
  %v697 = vsub.s32 4294967266, %v692
  %v698 = vadd.s32 %v697, 127
  %v699 = vshll.u32 %v698, 23
  %v700 = vor.u32 4788187, %v699
  %v701 = vand.u32 2147483647, %v700
  %v703 = vcvt.s32.f32 %v696
  %v704 = vmul.f32 %v703, %v701
  %v705 = vxor.u32 %v704, 2147483648
  %v706 = vsel %vm623, %v705, %v704
  %v707 = vsub.s32 4, %v683
  %v708 = vsel %vm623, %v707, %v683
  %v709 = vsel %vm622, %v515, %v706
  %v710 = vsel %vm622, 0, %v708
  %v711 = vcosq.f32.pop %v709
  %v712 = vsinq.f32.pop %v709
  %vm713 = vweird.f32 %v515
  %v714 = vadd.s32 %v710, 3
  %v715 = vand.u32 %v714, 3
  %vm716 = vcmp.lt.s32.totalorder %v715, 2
  %vm717 = vcmp.eq.s32.totalorder %v715, 0
  %v718 = vxor.u32 %v712, 2147483648
  %v719 = vsel %vm717, %v711, %v718
  %vm720 = vcmp.eq.s32.totalorder %v715, 2
  %v721 = vxor.u32 %v711, 2147483648
  %v722 = vsel %vm720, %v721, %v712
  %v723 = vsel %vm716, %v719, %v722
  %v724 = vsel %vm713, nan, %v723
  %v725 = vld [vmem:[%s2] sm:$0xff]
  %vm726 = vcmask 64512
  %v728 = vsel %vm726, %v725, 0
  %730 = vmatprep.subr.mxu0 0.0
  %v731 = vand.u32 %v620, 4294901760
  %732 = vmatpush1.msra.mxu0 %v731
  %733 = vmatprep.subr.mxu0 0.0
  %734 = vmatpush1.msra.mxu0 0.0
  %735 = vmatprep.subr.mxu0 0.0
  %736 = vmatpush1.msra.mxu0 0.0
  %737 = vmatprep.subr.mxu0 0.0
  %738 = vmatpush1.msra.mxu0 0.0
  %739 = vmatprep.subr.mxu0 0.0
  %740 = vmatpush1.msra.mxu0 0.0
  %741 = vmatprep.subr.mxu0 0.0
  %742 = vmatpush1.msra.mxu0 0.0
  %743 = vmatprep.subr.mxu0 0.0
  %744 = vmatpush1.msra.mxu0 0.0
  %745 = vmatprep.subr.mxu0 0.0
  %746 = vmatpush1.msra.mxu0 0.0
  %747 = vmatprep.subr.mxu0 0.0
  %748 = vmatpush1.msra.mxu0 0.0
  %749 = vmatprep.subr.mxu0 0.0
  %750 = vmatpush1.msra.mxu0 0.0
  %751 = vmatprep.subr.mxu0 0.0
  %752 = vmatpush1.msra.mxu0 0.0
  %753 = vmatprep.subr.mxu0 0.0
  %754 = vmatpush1.msra.mxu0 0.0
  %755 = vmatprep.subr.mxu0 0.0
  %756 = vmatpush1.msra.mxu0 0.0
  %757 = vmatprep.subr.mxu0 0.0
  %758 = vmatpush1.msra.mxu0 0.0
  %759 = vmatprep.subr.mxu0 0.0
  %760 = vmatpush1.msra.mxu0 0.0
  %761 = vmatprep.subr.mxu0 0.0
  %762 = vmatpush1.msra.mxu0 0.0
  %763 = vmatprep.subr.mxu0 0.0
  %764 = vmatpush1.msra.mxu0 0.0
  %765 = vmatprep.subr.mxu0 0.0
  %766 = vmatpush1.msra.mxu0 0.0
  %767 = vmatprep.subr.mxu0 0.0
  %768 = vmatpush1.msra.mxu0 0.0
  %769 = vmatprep.subr.mxu0 0.0
  %770 = vmatpush1.msra.mxu0 0.0
  %771 = vmatprep.subr.mxu0 0.0
  %772 = vmatpush1.msra.mxu0 0.0
  %773 = vmatprep.subr.mxu0 0.0
  %774 = vmatpush1.msra.mxu0 0.0
  %775 = vmatprep.subr.mxu0 0.0
  %776 = vmatpush1.msra.mxu0 0.0
  %777 = vmatprep.subr.mxu0 0.0
  %778 = vmatpush1.msra.mxu0 0.0
  %779 = vmatprep.subr.mxu0 0.0
  %780 = vmatpush1.msra.mxu0 0.0
  %781 = vmatprep.subr.mxu0 0.0
  %782 = vmatpush1.msra.mxu0 0.0
  %783 = vmatprep.subr.mxu0 0.0
  %784 = vmatpush1.msra.mxu0 0.0
  %785 = vmatprep.subr.mxu0 0.0
  %786 = vmatpush1.msra.mxu0 0.0
  %787 = vmatprep.subr.mxu0 0.0
  %788 = vmatpush1.msra.mxu0 0.0
  %789 = vmatprep.subr.mxu0 0.0
  %790 = vmatpush1.msra.mxu0 0.0
  %791 = vmatprep.subr.mxu0 0.0
  %792 = vmatpush1.msra.mxu0 0.0
  %793 = vmatprep.subr.mxu0 0.0
  %794 = vmatpush1.msra.mxu0 0.0
  %795 = vmatprep.mubr.f32.mxu0 0.0
  %v796 = vand.u32 %v728, 4294901760
  %v797 = vsub.f32 %v728, %v796
  %v798 = vand.u32 %v797, 4294901760
  %v799 = vsub.f32 %v797, %v798
  %v800 = vand.u32 %v799, 4294901760
  %801 = vmatmul.mubr.f32.gmra.mrb[0].mxu0 %v800
  %v802 = vpop.f32.mrb[0].mxu0
  %v803 = vadd.f32 0.0, %v802
  %v804 = vpop.f32.mrb[0].mxu0
  %805 = vdwg.mxu0
  %806 = vmatprep.subr.mxu0 0.0
  %v807 = vand.u32 %v620, 4294901760
  %v808 = vsub.f32 %v620, %v807
  %v809 = vand.u32 %v808, 4294901760
  %v810 = vsub.f32 %v808, %v809
  %v811 = vand.u32 %v810, 4294901760
  %812 = vmatpush1.msra.mxu0 %v811
  %813 = vmatprep.subr.mxu0 0.0
  %814 = vmatpush1.msra.mxu0 0.0
  %815 = vmatprep.subr.mxu0 0.0
  %816 = vmatpush1.msra.mxu0 0.0
  %817 = vmatprep.subr.mxu0 0.0
  %818 = vmatpush1.msra.mxu0 0.0
  %819 = vmatprep.subr.mxu0 0.0
  %820 = vmatpush1.msra.mxu0 0.0
  %821 = vmatprep.subr.mxu0 0.0
  %822 = vmatpush1.msra.mxu0 0.0
  %823 = vmatprep.subr.mxu0 0.0
  %824 = vmatpush1.msra.mxu0 0.0
  %825 = vmatprep.subr.mxu0 0.0
  %826 = vmatpush1.msra.mxu0 0.0
  %827 = vmatprep.subr.mxu0 0.0
  %828 = vmatpush1.msra.mxu0 0.0
  %829 = vmatprep.subr.mxu0 0.0
  %830 = vmatpush1.msra.mxu0 0.0
  %831 = vmatprep.subr.mxu0 0.0
  %832 = vmatpush1.msra.mxu0 0.0
  %833 = vmatprep.subr.mxu0 0.0
  %834 = vmatpush1.msra.mxu0 0.0
  %835 = vmatprep.subr.mxu0 0.0
  %836 = vmatpush1.msra.mxu0 0.0
  %837 = vmatprep.subr.mxu0 0.0
  %838 = vmatpush1.msra.mxu0 0.0
  %839 = vmatprep.subr.mxu0 0.0
  %840 = vmatpush1.msra.mxu0 0.0
  %841 = vmatprep.subr.mxu0 0.0
  %842 = vmatpush1.msra.mxu0 0.0
  %843 = vmatprep.subr.mxu0 0.0
  %844 = vmatpush1.msra.mxu0 0.0
  %845 = vmatprep.subr.mxu0 0.0
  %846 = vmatpush1.msra.mxu0 0.0
  %847 = vmatprep.subr.mxu0 0.0
  %848 = vmatpush1.msra.mxu0 0.0
  %849 = vmatprep.subr.mxu0 0.0
  %850 = vmatpush1.msra.mxu0 0.0
  %851 = vmatprep.subr.mxu0 0.0
  %852 = vmatpush1.msra.mxu0 0.0
  %853 = vmatprep.subr.mxu0 0.0
  %854 = vmatpush1.msra.mxu0 0.0
  %855 = vmatprep.subr.mxu0 0.0
  %856 = vmatpush1.msra.mxu0 0.0
  %857 = vmatprep.subr.mxu0 0.0
  %858 = vmatpush1.msra.mxu0 0.0
  %859 = vmatprep.subr.mxu0 0.0
  %860 = vmatpush1.msra.mxu0 0.0
  %861 = vmatprep.subr.mxu0 0.0
  %862 = vmatpush1.msra.mxu0 0.0
  %863 = vmatprep.subr.mxu0 0.0
  %864 = vmatpush1.msra.mxu0 0.0
  %865 = vmatprep.subr.mxu0 0.0
  %866 = vmatpush1.msra.mxu0 0.0
  %867 = vmatprep.subr.mxu0 0.0
  %868 = vmatpush1.msra.mxu0 0.0
  %869 = vmatprep.subr.mxu0 0.0
  %870 = vmatpush1.msra.mxu0 0.0
  %871 = vmatprep.subr.mxu0 0.0
  %872 = vmatpush1.msra.mxu0 0.0
  %873 = vmatprep.subr.mxu0 0.0
  %874 = vmatpush1.msra.mxu0 0.0
  %875 = vmatprep.mubr.f32.mxu0 0.0
  %v876 = vand.u32 %v728, 4294901760
  %877 = vmatmul.mubr.f32.gmra.mrb[0].mxu0 %v876
  %v878 = vpop.f32.mrb[0].mxu0
  %v879 = vadd.f32 %v803, %v878
  %v880 = vpop.f32.mrb[0].mxu0
  %881 = vdwg.mxu0
  %882 = vmatprep.subr.mxu0 0.0
  %v883 = vand.u32 %v620, 4294901760
  %v884 = vsub.f32 %v620, %v883
  %885 = vmatpush1.msra.mxu0 %v884
  %886 = vmatprep.subr.mxu0 0.0
  %887 = vmatpush1.msra.mxu0 0.0
  %888 = vmatprep.subr.mxu0 0.0
  %889 = vmatpush1.msra.mxu0 0.0
  %890 = vmatprep.subr.mxu0 0.0
  %891 = vmatpush1.msra.mxu0 0.0
  %892 = vmatprep.subr.mxu0 0.0
  %893 = vmatpush1.msra.mxu0 0.0
  %894 = vmatprep.subr.mxu0 0.0
  %895 = vmatpush1.msra.mxu0 0.0
  %896 = vmatprep.subr.mxu0 0.0
  %897 = vmatpush1.msra.mxu0 0.0
  %898 = vmatprep.subr.mxu0 0.0
  %899 = vmatpush1.msra.mxu0 0.0
  %900 = vmatprep.subr.mxu0 0.0
  %901 = vmatpush1.msra.mxu0 0.0
  %902 = vmatprep.subr.mxu0 0.0
  %903 = vmatpush1.msra.mxu0 0.0
  %904 = vmatprep.subr.mxu0 0.0
  %905 = vmatpush1.msra.mxu0 0.0
  %906 = vmatprep.subr.mxu0 0.0
  %907 = vmatpush1.msra.mxu0 0.0
  %908 = vmatprep.subr.mxu0 0.0
  %909 = vmatpush1.msra.mxu0 0.0
  %910 = vmatprep.subr.mxu0 0.0
  %911 = vmatpush1.msra.mxu0 0.0
  %912 = vmatprep.subr.mxu0 0.0
  %913 = vmatpush1.msra.mxu0 0.0
  %914 = vmatprep.subr.mxu0 0.0
  %915 = vmatpush1.msra.mxu0 0.0
  %916 = vmatprep.subr.mxu0 0.0
  %917 = vmatpush1.msra.mxu0 0.0
  %918 = vmatprep.subr.mxu0 0.0
  %919 = vmatpush1.msra.mxu0 0.0
  %920 = vmatprep.subr.mxu0 0.0
  %921 = vmatpush1.msra.mxu0 0.0
  %922 = vmatprep.subr.mxu0 0.0
  %923 = vmatpush1.msra.mxu0 0.0
  %924 = vmatprep.subr.mxu0 0.0
  %925 = vmatpush1.msra.mxu0 0.0
  %926 = vmatprep.subr.mxu0 0.0
  %927 = vmatpush1.msra.mxu0 0.0
  %928 = vmatprep.subr.mxu0 0.0
  %929 = vmatpush1.msra.mxu0 0.0
  %930 = vmatprep.subr.mxu0 0.0
  %931 = vmatpush1.msra.mxu0 0.0
  %932 = vmatprep.subr.mxu0 0.0
  %933 = vmatpush1.msra.mxu0 0.0
  %934 = vmatprep.subr.mxu0 0.0
  %935 = vmatpush1.msra.mxu0 0.0
  %936 = vmatprep.subr.mxu0 0.0
  %937 = vmatpush1.msra.mxu0 0.0
  %938 = vmatprep.subr.mxu0 0.0
  %939 = vmatpush1.msra.mxu0 0.0
  %940 = vmatprep.subr.mxu0 0.0
  %941 = vmatpush1.msra.mxu0 0.0
  %942 = vmatprep.subr.mxu0 0.0
  %943 = vmatpush1.msra.mxu0 0.0
  %944 = vmatprep.subr.mxu0 0.0
  %945 = vmatpush1.msra.mxu0 0.0
  %946 = vmatprep.subr.mxu0 0.0
  %947 = vmatpush1.msra.mxu0 0.0
  %948 = vmatprep.mubr.f32.mxu0 0.0
  %v949 = vand.u32 %v728, 4294901760
  %v950 = vsub.f32 %v728, %v949
  %951 = vmatmul.mubr.f32.gmra.mrb[0].mxu0 %v950
  %v952 = vpop.f32.mrb[0].mxu0
  %v953 = vadd.f32 %v879, %v952
  %v954 = vpop.f32.mrb[0].mxu0
  %955 = vdwg.mxu0
  %956 = vmatprep.subr.mxu0 0.0
  %v957 = vand.u32 %v620, 4294901760
  %958 = vmatpush1.msra.mxu0 %v957
  %959 = vmatprep.subr.mxu0 0.0
  %960 = vmatpush1.msra.mxu0 0.0
  %961 = vmatprep.subr.mxu0 0.0
  %962 = vmatpush1.msra.mxu0 0.0
  %963 = vmatprep.subr.mxu0 0.0
  %964 = vmatpush1.msra.mxu0 0.0
  %965 = vmatprep.subr.mxu0 0.0
  %966 = vmatpush1.msra.mxu0 0.0
  %967 = vmatprep.subr.mxu0 0.0
  %968 = vmatpush1.msra.mxu0 0.0
  %969 = vmatprep.subr.mxu0 0.0
  %970 = vmatpush1.msra.mxu0 0.0
  %971 = vmatprep.subr.mxu0 0.0
  %972 = vmatpush1.msra.mxu0 0.0
  %973 = vmatprep.subr.mxu0 0.0
  %974 = vmatpush1.msra.mxu0 0.0
  %975 = vmatprep.subr.mxu0 0.0
  %976 = vmatpush1.msra.mxu0 0.0
  %977 = vmatprep.subr.mxu0 0.0
  %978 = vmatpush1.msra.mxu0 0.0
  %979 = vmatprep.subr.mxu0 0.0
  %980 = vmatpush1.msra.mxu0 0.0
  %981 = vmatprep.subr.mxu0 0.0
  %982 = vmatpush1.msra.mxu0 0.0
  %983 = vmatprep.subr.mxu0 0.0
  %984 = vmatpush1.msra.mxu0 0.0
  %985 = vmatprep.subr.mxu0 0.0
  %986 = vmatpush1.msra.mxu0 0.0
  %987 = vmatprep.subr.mxu0 0.0
  %988 = vmatpush1.msra.mxu0 0.0
  %989 = vmatprep.subr.mxu0 0.0
  %990 = vmatpush1.msra.mxu0 0.0
  %991 = vmatprep.subr.mxu0 0.0
  %992 = vmatpush1.msra.mxu0 0.0
  %993 = vmatprep.subr.mxu0 0.0
  %994 = vmatpush1.msra.mxu0 0.0
  %995 = vmatprep.subr.mxu0 0.0
  %996 = vmatpush1.msra.mxu0 0.0
  %997 = vmatprep.subr.mxu0 0.0
  %998 = vmatpush1.msra.mxu0 0.0
  %999 = vmatprep.subr.mxu0 0.0
  %1000 = vmatpush1.msra.mxu0 0.0
  %1001 = vmatprep.subr.mxu0 0.0
  %1002 = vmatpush1.msra.mxu0 0.0
  %1003 = vmatprep.subr.mxu0 0.0
  %1004 = vmatpush1.msra.mxu0 0.0
  %1005 = vmatprep.subr.mxu0 0.0
  %1006 = vmatpush1.msra.mxu0 0.0
  %1007 = vmatprep.subr.mxu0 0.0
  %1008 = vmatpush1.msra.mxu0 0.0
  %1009 = vmatprep.subr.mxu0 0.0
  %1010 = vmatpush1.msra.mxu0 0.0
  %1011 = vmatprep.subr.mxu0 0.0
  %1012 = vmatpush1.msra.mxu0 0.0
  %1013 = vmatprep.subr.mxu0 0.0
  %1014 = vmatpush1.msra.mxu0 0.0
  %1015 = vmatprep.subr.mxu0 0.0
  %1016 = vmatpush1.msra.mxu0 0.0
  %1017 = vmatprep.subr.mxu0 0.0
  %1018 = vmatpush1.msra.mxu0 0.0
  %1019 = vmatprep.subr.mxu0 0.0
  %1020 = vmatpush1.msra.mxu0 0.0
  %1021 = vmatprep.mubr.f32.mxu0 0.0
  %v1022 = vand.u32 %v728, 4294901760
  %v1023 = vsub.f32 %v728, %v1022
  %v1024 = vand.u32 %v1023, 4294901760
  %1025 = vmatmul.mubr.f32.gmra.mrb[0].mxu0 %v1024
  %v1026 = vpop.f32.mrb[0].mxu0
  %v1027 = vadd.f32 %v953, %v1026
  %v1028 = vpop.f32.mrb[0].mxu0
  %1029 = vdwg.mxu0
  %1030 = vmatprep.subr.mxu0 0.0
  %v1031 = vand.u32 %v620, 4294901760
  %v1032 = vsub.f32 %v620, %v1031
  %v1033 = vand.u32 %v1032, 4294901760
  %1034 = vmatpush1.msra.mxu0 %v1033
  %1035 = vmatprep.subr.mxu0 0.0
  %1036 = vmatpush1.msra.mxu0 0.0
  %1037 = vmatprep.subr.mxu0 0.0
  %1038 = vmatpush1.msra.mxu0 0.0
  %1039 = vmatprep.subr.mxu0 0.0
  %1040 = vmatpush1.msra.mxu0 0.0
  %1041 = vmatprep.subr.mxu0 0.0
  %1042 = vmatpush1.msra.mxu0 0.0
  %1043 = vmatprep.subr.mxu0 0.0
  %1044 = vmatpush1.msra.mxu0 0.0
  %1045 = vmatprep.subr.mxu0 0.0
  %1046 = vmatpush1.msra.mxu0 0.0
  %1047 = vmatprep.subr.mxu0 0.0
  %1048 = vmatpush1.msra.mxu0 0.0
  %1049 = vmatprep.subr.mxu0 0.0
  %1050 = vmatpush1.msra.mxu0 0.0
  %1051 = vmatprep.subr.mxu0 0.0
  %1052 = vmatpush1.msra.mxu0 0.0
  %1053 = vmatprep.subr.mxu0 0.0
  %1054 = vmatpush1.msra.mxu0 0.0
  %1055 = vmatprep.subr.mxu0 0.0
  %1056 = vmatpush1.msra.mxu0 0.0
  %1057 = vmatprep.subr.mxu0 0.0
  %1058 = vmatpush1.msra.mxu0 0.0
  %1059 = vmatprep.subr.mxu0 0.0
  %1060 = vmatpush1.msra.mxu0 0.0
  %1061 = vmatprep.subr.mxu0 0.0
  %1062 = vmatpush1.msra.mxu0 0.0
  %1063 = vmatprep.subr.mxu0 0.0
  %1064 = vmatpush1.msra.mxu0 0.0
  %1065 = vmatprep.subr.mxu0 0.0
  %1066 = vmatpush1.msra.mxu0 0.0
  %1067 = vmatprep.subr.mxu0 0.0
  %1068 = vmatpush1.msra.mxu0 0.0
  %1069 = vmatprep.subr.mxu0 0.0
  %1070 = vmatpush1.msra.mxu0 0.0
  %1071 = vmatprep.subr.mxu0 0.0
  %1072 = vmatpush1.msra.mxu0 0.0
  %1073 = vmatprep.subr.mxu0 0.0
  %1074 = vmatpush1.msra.mxu0 0.0
  %1075 = vmatprep.subr.mxu0 0.0
  %1076 = vmatpush1.msra.mxu0 0.0
  %1077 = vmatprep.subr.mxu0 0.0
  %1078 = vmatpush1.msra.mxu0 0.0
  %1079 = vmatprep.subr.mxu0 0.0
  %1080 = vmatpush1.msra.mxu0 0.0
  %1081 = vmatprep.subr.mxu0 0.0
  %1082 = vmatpush1.msra.mxu0 0.0
  %1083 = vmatprep.subr.mxu0 0.0
  %1084 = vmatpush1.msra.mxu0 0.0
  %1085 = vmatprep.subr.mxu0 0.0
  %1086 = vmatpush1.msra.mxu0 0.0
  %1087 = vmatprep.subr.mxu0 0.0
  %1088 = vmatpush1.msra.mxu0 0.0
  %1089 = vmatprep.subr.mxu0 0.0
  %1090 = vmatpush1.msra.mxu0 0.0
  %1091 = vmatprep.subr.mxu0 0.0
  %1092 = vmatpush1.msra.mxu0 0.0
  %1093 = vmatprep.subr.mxu0 0.0
  %1094 = vmatpush1.msra.mxu0 0.0
  %1095 = vmatprep.subr.mxu0 0.0
  %1096 = vmatpush1.msra.mxu0 0.0
  %1097 = vmatprep.mubr.f32.mxu0 0.0
  %v1098 = vand.u32 %v728, 4294901760
  %1099 = vmatmul.mubr.f32.gmra.mrb[0].mxu0 %v1098
  %v1100 = vpop.f32.mrb[0].mxu0
  %v1101 = vadd.f32 %v1027, %v1100
  %v1102 = vpop.f32.mrb[0].mxu0
  %1103 = vdwg.mxu0
  %1104 = vmatprep.subr.mxu0 0.0
  %v1105 = vand.u32 %v620, 4294901760
  %1106 = vmatpush1.msra.mxu0 %v1105
  %1107 = vmatprep.subr.mxu0 0.0
  %1108 = vmatpush1.msra.mxu0 0.0
  %1109 = vmatprep.subr.mxu0 0.0
  %1110 = vmatpush1.msra.mxu0 0.0
  %1111 = vmatprep.subr.mxu0 0.0
  %1112 = vmatpush1.msra.mxu0 0.0
  %1113 = vmatprep.subr.mxu0 0.0
  %1114 = vmatpush1.msra.mxu0 0.0
  %1115 = vmatprep.subr.mxu0 0.0
  %1116 = vmatpush1.msra.mxu0 0.0
  %1117 = vmatprep.subr.mxu0 0.0
  %1118 = vmatpush1.msra.mxu0 0.0
  %1119 = vmatprep.subr.mxu0 0.0
  %1120 = vmatpush1.msra.mxu0 0.0
  %1121 = vmatprep.subr.mxu0 0.0
  %1122 = vmatpush1.msra.mxu0 0.0
  %1123 = vmatprep.subr.mxu0 0.0
  %1124 = vmatpush1.msra.mxu0 0.0
  %1125 = vmatprep.subr.mxu0 0.0
  %1126 = vmatpush1.msra.mxu0 0.0
  %1127 = vmatprep.subr.mxu0 0.0
  %1128 = vmatpush1.msra.mxu0 0.0
  %1129 = vmatprep.subr.mxu0 0.0
  %1130 = vmatpush1.msra.mxu0 0.0
  %1131 = vmatprep.subr.mxu0 0.0
  %1132 = vmatpush1.msra.mxu0 0.0
  %1133 = vmatprep.subr.mxu0 0.0
  %1134 = vmatpush1.msra.mxu0 0.0
  %1135 = vmatprep.subr.mxu0 0.0
  %1136 = vmatpush1.msra.mxu0 0.0
  %1137 = vmatprep.subr.mxu0 0.0
  %1138 = vmatpush1.msra.mxu0 0.0
  %1139 = vmatprep.subr.mxu0 0.0
  %1140 = vmatpush1.msra.mxu0 0.0
  %1141 = vmatprep.subr.mxu0 0.0
  %1142 = vmatpush1.msra.mxu0 0.0
  %1143 = vmatprep.subr.mxu0 0.0
  %1144 = vmatpush1.msra.mxu0 0.0
  %1145 = vmatprep.subr.mxu0 0.0
  %1146 = vmatpush1.msra.mxu0 0.0
  %1147 = vmatprep.subr.mxu0 0.0
  %1148 = vmatpush1.msra.mxu0 0.0
  %1149 = vmatprep.subr.mxu0 0.0
  %1150 = vmatpush1.msra.mxu0 0.0
  %1151 = vmatprep.subr.mxu0 0.0
  %1152 = vmatpush1.msra.mxu0 0.0
  %1153 = vmatprep.subr.mxu0 0.0
  %1154 = vmatpush1.msra.mxu0 0.0
  %1155 = vmatprep.subr.mxu0 0.0
  %1156 = vmatpush1.msra.mxu0 0.0
  %1157 = vmatprep.subr.mxu0 0.0
  %1158 = vmatpush1.msra.mxu0 0.0
  %1159 = vmatprep.subr.mxu0 0.0
  %1160 = vmatpush1.msra.mxu0 0.0
  %1161 = vmatprep.subr.mxu0 0.0
  %1162 = vmatpush1.msra.mxu0 0.0
  %1163 = vmatprep.subr.mxu0 0.0
  %1164 = vmatpush1.msra.mxu0 0.0
  %1165 = vmatprep.subr.mxu0 0.0
  %1166 = vmatpush1.msra.mxu0 0.0
  %1167 = vmatprep.subr.mxu0 0.0
  %1168 = vmatpush1.msra.mxu0 0.0
  %1169 = vmatprep.mubr.f32.mxu0 0.0
  %v1170 = vand.u32 %v728, 4294901760
  %1171 = vmatmul.mubr.f32.gmra.mrb[0].mxu0 %v1170
  %v1172 = vpop.f32.mrb[0].mxu0
  %v1173 = vadd.f32 %v1101, %v1172
  %v1174 = vpop.f32.mrb[0].mxu0
  %1175 = vdwg.mxu0
  %1176 = vmatprep.subr.mxu0 0.0
  %v1177 = vand.u32 %v724, 4294901760
  %1178 = vmatpush1.msra.mxu0 %v1177
  %1179 = vmatprep.subr.mxu0 0.0
  %1180 = vmatpush1.msra.mxu0 0.0
  %1181 = vmatprep.subr.mxu0 0.0
  %1182 = vmatpush1.msra.mxu0 0.0
  %1183 = vmatprep.subr.mxu0 0.0
  %1184 = vmatpush1.msra.mxu0 0.0
  %1185 = vmatprep.subr.mxu0 0.0
  %1186 = vmatpush1.msra.mxu0 0.0
  %1187 = vmatprep.subr.mxu0 0.0
  %1188 = vmatpush1.msra.mxu0 0.0
  %1189 = vmatprep.subr.mxu0 0.0
  %1190 = vmatpush1.msra.mxu0 0.0
  %1191 = vmatprep.subr.mxu0 0.0
  %1192 = vmatpush1.msra.mxu0 0.0
  %1193 = vmatprep.subr.mxu0 0.0
  %1194 = vmatpush1.msra.mxu0 0.0
  %1195 = vmatprep.subr.mxu0 0.0
  %1196 = vmatpush1.msra.mxu0 0.0
  %1197 = vmatprep.subr.mxu0 0.0
  %1198 = vmatpush1.msra.mxu0 0.0
  %1199 = vmatprep.subr.mxu0 0.0
  %1200 = vmatpush1.msra.mxu0 0.0
  %1201 = vmatprep.subr.mxu0 0.0
  %1202 = vmatpush1.msra.mxu0 0.0
  %1203 = vmatprep.subr.mxu0 0.0
  %1204 = vmatpush1.msra.mxu0 0.0
  %1205 = vmatprep.subr.mxu0 0.0
  %1206 = vmatpush1.msra.mxu0 0.0
  %1207 = vmatprep.subr.mxu0 0.0
  %1208 = vmatpush1.msra.mxu0 0.0
  %1209 = vmatprep.subr.mxu0 0.0
  %1210 = vmatpush1.msra.mxu0 0.0
  %1211 = vmatprep.subr.mxu0 0.0
  %1212 = vmatpush1.msra.mxu0 0.0
  %1213 = vmatprep.subr.mxu0 0.0
  %1214 = vmatpush1.msra.mxu0 0.0
  %1215 = vmatprep.subr.mxu0 0.0
  %1216 = vmatpush1.msra.mxu0 0.0
  %1217 = vmatprep.subr.mxu0 0.0
  %1218 = vmatpush1.msra.mxu0 0.0
  %1219 = vmatprep.subr.mxu0 0.0
  %1220 = vmatpush1.msra.mxu0 0.0
  %1221 = vmatprep.subr.mxu0 0.0
  %1222 = vmatpush1.msra.mxu0 0.0
  %1223 = vmatprep.subr.mxu0 0.0
  %1224 = vmatpush1.msra.mxu0 0.0
  %1225 = vmatprep.subr.mxu0 0.0
  %1226 = vmatpush1.msra.mxu0 0.0
  %1227 = vmatprep.subr.mxu0 0.0
  %1228 = vmatpush1.msra.mxu0 0.0
  %1229 = vmatprep.subr.mxu0 0.0
  %1230 = vmatpush1.msra.mxu0 0.0
  %1231 = vmatprep.subr.mxu0 0.0
  %1232 = vmatpush1.msra.mxu0 0.0
  %1233 = vmatprep.subr.mxu0 0.0
  %1234 = vmatpush1.msra.mxu0 0.0
  %1235 = vmatprep.subr.mxu0 0.0
  %1236 = vmatpush1.msra.mxu0 0.0
  %1237 = vmatprep.subr.mxu0 0.0
  %1238 = vmatpush1.msra.mxu0 0.0
  %1239 = vmatprep.subr.mxu0 0.0
  %1240 = vmatpush1.msra.mxu0 0.0
  %1241 = vmatprep.mubr.f32.mxu0 0.0
  %v1242 = vand.u32 %v728, 4294901760
  %v1243 = vsub.f32 %v728, %v1242
  %v1244 = vand.u32 %v1243, 4294901760
  %v1245 = vsub.f32 %v1243, %v1244
  %v1246 = vand.u32 %v1245, 4294901760
  %1247 = vmatmul.mubr.f32.gmra.mrb[0].mxu0 %v1246
  %v1248 = vpop.f32.mrb[0].mxu0
  %v1249 = vadd.f32 0.0, %v1248
  %v1250 = vpop.f32.mrb[0].mxu0
  %1251 = vdwg.mxu0
  %1252 = vmatprep.subr.mxu0 0.0
  %v1253 = vand.u32 %v724, 4294901760
  %v1254 = vsub.f32 %v724, %v1253
  %v1255 = vand.u32 %v1254, 4294901760
  %v1256 = vsub.f32 %v1254, %v1255
  %v1257 = vand.u32 %v1256, 4294901760
  %1258 = vmatpush1.msra.mxu0 %v1257
  %1259 = vmatprep.subr.mxu0 0.0
  %1260 = vmatpush1.msra.mxu0 0.0
  %1261 = vmatprep.subr.mxu0 0.0
  %1262 = vmatpush1.msra.mxu0 0.0
  %1263 = vmatprep.subr.mxu0 0.0
  %1264 = vmatpush1.msra.mxu0 0.0
  %1265 = vmatprep.subr.mxu0 0.0
  %1266 = vmatpush1.msra.mxu0 0.0
  %1267 = vmatprep.subr.mxu0 0.0
  %1268 = vmatpush1.msra.mxu0 0.0
  %1269 = vmatprep.subr.mxu0 0.0
  %1270 = vmatpush1.msra.mxu0 0.0
  %1271 = vmatprep.subr.mxu0 0.0
  %1272 = vmatpush1.msra.mxu0 0.0
  %1273 = vmatprep.subr.mxu0 0.0
  %1274 = vmatpush1.msra.mxu0 0.0
  %1275 = vmatprep.subr.mxu0 0.0
  %1276 = vmatpush1.msra.mxu0 0.0
  %1277 = vmatprep.subr.mxu0 0.0
  %1278 = vmatpush1.msra.mxu0 0.0
  %1279 = vmatprep.subr.mxu0 0.0
  %1280 = vmatpush1.msra.mxu0 0.0
  %1281 = vmatprep.subr.mxu0 0.0
  %1282 = vmatpush1.msra.mxu0 0.0
  %1283 = vmatprep.subr.mxu0 0.0
  %1284 = vmatpush1.msra.mxu0 0.0
  %1285 = vmatprep.subr.mxu0 0.0
  %1286 = vmatpush1.msra.mxu0 0.0
  %1287 = vmatprep.subr.mxu0 0.0
  %1288 = vmatpush1.msra.mxu0 0.0
  %1289 = vmatprep.subr.mxu0 0.0
  %1290 = vmatpush1.msra.mxu0 0.0
  %1291 = vmatprep.subr.mxu0 0.0
  %1292 = vmatpush1.msra.mxu0 0.0
  %1293 = vmatprep.subr.mxu0 0.0
  %1294 = vmatpush1.msra.mxu0 0.0
  %1295 = vmatprep.subr.mxu0 0.0
  %1296 = vmatpush1.msra.mxu0 0.0
  %1297 = vmatprep.subr.mxu0 0.0
  %1298 = vmatpush1.msra.mxu0 0.0
  %1299 = vmatprep.subr.mxu0 0.0
  %1300 = vmatpush1.msra.mxu0 0.0
  %1301 = vmatprep.subr.mxu0 0.0
  %1302 = vmatpush1.msra.mxu0 0.0
  %1303 = vmatprep.subr.mxu0 0.0
  %1304 = vmatpush1.msra.mxu0 0.0
  %1305 = vmatprep.subr.mxu0 0.0
  %1306 = vmatpush1.msra.mxu0 0.0
  %1307 = vmatprep.subr.mxu0 0.0
  %1308 = vmatpush1.msra.mxu0 0.0
  %1309 = vmatprep.subr.mxu0 0.0
  %1310 = vmatpush1.msra.mxu0 0.0
  %1311 = vmatprep.subr.mxu0 0.0
  %1312 = vmatpush1.msra.mxu0 0.0
  %1313 = vmatprep.subr.mxu0 0.0
  %1314 = vmatpush1.msra.mxu0 0.0
  %1315 = vmatprep.subr.mxu0 0.0
  %1316 = vmatpush1.msra.mxu0 0.0
  %1317 = vmatprep.subr.mxu0 0.0
  %1318 = vmatpush1.msra.mxu0 0.0
  %1319 = vmatprep.subr.mxu0 0.0
  %1320 = vmatpush1.msra.mxu0 0.0
  %1321 = vmatprep.mubr.f32.mxu0 0.0
  %v1322 = vand.u32 %v728, 4294901760
  %1323 = vmatmul.mubr.f32.gmra.mrb[0].mxu0 %v1322
  %v1324 = vpop.f32.mrb[0].mxu0
  %v1325 = vadd.f32 %v1249, %v1324
  %v1326 = vpop.f32.mrb[0].mxu0
  %1327 = vdwg.mxu0
  %1328 = vmatprep.subr.mxu0 0.0
  %v1329 = vand.u32 %v724, 4294901760
  %v1330 = vsub.f32 %v724, %v1329
  %1331 = vmatpush1.msra.mxu0 %v1330
  %1332 = vmatprep.subr.mxu0 0.0
  %1333 = vmatpush1.msra.mxu0 0.0
  %1334 = vmatprep.subr.mxu0 0.0
  %1335 = vmatpush1.msra.mxu0 0.0
  %1336 = vmatprep.subr.mxu0 0.0
  %1337 = vmatpush1.msra.mxu0 0.0
  %1338 = vmatprep.subr.mxu0 0.0
  %1339 = vmatpush1.msra.mxu0 0.0
  %1340 = vmatprep.subr.mxu0 0.0
  %1341 = vmatpush1.msra.mxu0 0.0
  %1342 = vmatprep.subr.mxu0 0.0
  %1343 = vmatpush1.msra.mxu0 0.0
  %1344 = vmatprep.subr.mxu0 0.0
  %1345 = vmatpush1.msra.mxu0 0.0
  %1346 = vmatprep.subr.mxu0 0.0
  %1347 = vmatpush1.msra.mxu0 0.0
  %1348 = vmatprep.subr.mxu0 0.0
  %1349 = vmatpush1.msra.mxu0 0.0
  %1350 = vmatprep.subr.mxu0 0.0
  %1351 = vmatpush1.msra.mxu0 0.0
  %1352 = vmatprep.subr.mxu0 0.0
  %1353 = vmatpush1.msra.mxu0 0.0
  %1354 = vmatprep.subr.mxu0 0.0
  %1355 = vmatpush1.msra.mxu0 0.0
  %1356 = vmatprep.subr.mxu0 0.0
  %1357 = vmatpush1.msra.mxu0 0.0
  %1358 = vmatprep.subr.mxu0 0.0
  %1359 = vmatpush1.msra.mxu0 0.0
  %1360 = vmatprep.subr.mxu0 0.0
  %1361 = vmatpush1.msra.mxu0 0.0
  %1362 = vmatprep.subr.mxu0 0.0
  %1363 = vmatpush1.msra.mxu0 0.0
  %1364 = vmatprep.subr.mxu0 0.0
  %1365 = vmatpush1.msra.mxu0 0.0
  %1366 = vmatprep.subr.mxu0 0.0
  %1367 = vmatpush1.msra.mxu0 0.0
  %1368 = vmatprep.subr.mxu0 0.0
  %1369 = vmatpush1.msra.mxu0 0.0
  %1370 = vmatprep.subr.mxu0 0.0
  %1371 = vmatpush1.msra.mxu0 0.0
  %1372 = vmatprep.subr.mxu0 0.0
  %1373 = vmatpush1.msra.mxu0 0.0
  %1374 = vmatprep.subr.mxu0 0.0
  %1375 = vmatpush1.msra.mxu0 0.0
  %1376 = vmatprep.subr.mxu0 0.0
  %1377 = vmatpush1.msra.mxu0 0.0
  %1378 = vmatprep.subr.mxu0 0.0
  %1379 = vmatpush1.msra.mxu0 0.0
  %1380 = vmatprep.subr.mxu0 0.0
  %1381 = vmatpush1.msra.mxu0 0.0
  %1382 = vmatprep.subr.mxu0 0.0
  %1383 = vmatpush1.msra.mxu0 0.0
  %1384 = vmatprep.subr.mxu0 0.0
  %1385 = vmatpush1.msra.mxu0 0.0
  %1386 = vmatprep.subr.mxu0 0.0
  %1387 = vmatpush1.msra.mxu0 0.0
  %1388 = vmatprep.subr.mxu0 0.0
  %1389 = vmatpush1.msra.mxu0 0.0
  %1390 = vmatprep.subr.mxu0 0.0
  %1391 = vmatpush1.msra.mxu0 0.0
  %1392 = vmatprep.subr.mxu0 0.0
  %1393 = vmatpush1.msra.mxu0 0.0
  %1394 = vmatprep.mubr.f32.mxu0 0.0
  %v1395 = vand.u32 %v728, 4294901760
  %v1396 = vsub.f32 %v728, %v1395
  %1397 = vmatmul.mubr.f32.gmra.mrb[0].mxu0 %v1396
  %v1398 = vpop.f32.mrb[0].mxu0
  %v1399 = vadd.f32 %v1325, %v1398
  %v1400 = vpop.f32.mrb[0].mxu0
  %1401 = vdwg.mxu0
  %1402 = vmatprep.subr.mxu0 0.0
  %v1403 = vand.u32 %v724, 4294901760
  %1404 = vmatpush1.msra.mxu0 %v1403
  %1405 = vmatprep.subr.mxu0 0.0
  %1406 = vmatpush1.msra.mxu0 0.0
  %1407 = vmatprep.subr.mxu0 0.0
  %1408 = vmatpush1.msra.mxu0 0.0
  %1409 = vmatprep.subr.mxu0 0.0
  %1410 = vmatpush1.msra.mxu0 0.0
  %1411 = vmatprep.subr.mxu0 0.0
  %1412 = vmatpush1.msra.mxu0 0.0
  %1413 = vmatprep.subr.mxu0 0.0
  %1414 = vmatpush1.msra.mxu0 0.0
  %1415 = vmatprep.subr.mxu0 0.0
  %1416 = vmatpush1.msra.mxu0 0.0
  %1417 = vmatprep.subr.mxu0 0.0
  %1418 = vmatpush1.msra.mxu0 0.0
  %1419 = vmatprep.subr.mxu0 0.0
  %1420 = vmatpush1.msra.mxu0 0.0
  %1421 = vmatprep.subr.mxu0 0.0
  %1422 = vmatpush1.msra.mxu0 0.0
  %1423 = vmatprep.subr.mxu0 0.0
  %1424 = vmatpush1.msra.mxu0 0.0
  %1425 = vmatprep.subr.mxu0 0.0
  %1426 = vmatpush1.msra.mxu0 0.0
  %1427 = vmatprep.subr.mxu0 0.0
  %1428 = vmatpush1.msra.mxu0 0.0
  %1429 = vmatprep.subr.mxu0 0.0
  %1430 = vmatpush1.msra.mxu0 0.0
  %1431 = vmatprep.subr.mxu0 0.0
  %1432 = vmatpush1.msra.mxu0 0.0
  %1433 = vmatprep.subr.mxu0 0.0
  %1434 = vmatpush1.msra.mxu0 0.0
  %1435 = vmatprep.subr.mxu0 0.0
  %1436 = vmatpush1.msra.mxu0 0.0
  %1437 = vmatprep.subr.mxu0 0.0
  %1438 = vmatpush1.msra.mxu0 0.0
  %1439 = vmatprep.subr.mxu0 0.0
  %1440 = vmatpush1.msra.mxu0 0.0
  %1441 = vmatprep.subr.mxu0 0.0
  %1442 = vmatpush1.msra.mxu0 0.0
  %1443 = vmatprep.subr.mxu0 0.0
  %1444 = vmatpush1.msra.mxu0 0.0
  %1445 = vmatprep.subr.mxu0 0.0
  %1446 = vmatpush1.msra.mxu0 0.0
  %1447 = vmatprep.subr.mxu0 0.0
  %1448 = vmatpush1.msra.mxu0 0.0
  %1449 = vmatprep.subr.mxu0 0.0
  %1450 = vmatpush1.msra.mxu0 0.0
  %1451 = vmatprep.subr.mxu0 0.0
  %1452 = vmatpush1.msra.mxu0 0.0
  %1453 = vmatprep.subr.mxu0 0.0
  %1454 = vmatpush1.msra.mxu0 0.0
  %1455 = vmatprep.subr.mxu0 0.0
  %1456 = vmatpush1.msra.mxu0 0.0
  %1457 = vmatprep.subr.mxu0 0.0
  %1458 = vmatpush1.msra.mxu0 0.0
  %1459 = vmatprep.subr.mxu0 0.0
  %1460 = vmatpush1.msra.mxu0 0.0
  %1461 = vmatprep.subr.mxu0 0.0
  %1462 = vmatpush1.msra.mxu0 0.0
  %1463 = vmatprep.subr.mxu0 0.0
  %1464 = vmatpush1.msra.mxu0 0.0
  %1465 = vmatprep.subr.mxu0 0.0
  %1466 = vmatpush1.msra.mxu0 0.0
  %1467 = vmatprep.mubr.f32.mxu0 0.0
  %v1468 = vand.u32 %v728, 4294901760
  %v1469 = vsub.f32 %v728, %v1468
  %v1470 = vand.u32 %v1469, 4294901760
  %1471 = vmatmul.mubr.f32.gmra.mrb[0].mxu0 %v1470
  %v1472 = vpop.f32.mrb[0].mxu0
  %v1473 = vadd.f32 %v1399, %v1472
  %v1474 = vpop.f32.mrb[0].mxu0
  %1475 = vdwg.mxu0
  %1476 = vmatprep.subr.mxu0 0.0
  %v1477 = vand.u32 %v724, 4294901760
  %v1478 = vsub.f32 %v724, %v1477
  %v1479 = vand.u32 %v1478, 4294901760
  %1480 = vmatpush1.msra.mxu0 %v1479
  %1481 = vmatprep.subr.mxu0 0.0
  %1482 = vmatpush1.msra.mxu0 0.0
  %1483 = vmatprep.subr.mxu0 0.0
  %1484 = vmatpush1.msra.mxu0 0.0
  %1485 = vmatprep.subr.mxu0 0.0
  %1486 = vmatpush1.msra.mxu0 0.0
  %1487 = vmatprep.subr.mxu0 0.0
  %1488 = vmatpush1.msra.mxu0 0.0
  %1489 = vmatprep.subr.mxu0 0.0
  %1490 = vmatpush1.msra.mxu0 0.0
  %1491 = vmatprep.subr.mxu0 0.0
  %1492 = vmatpush1.msra.mxu0 0.0
  %1493 = vmatprep.subr.mxu0 0.0
  %1494 = vmatpush1.msra.mxu0 0.0
  %1495 = vmatprep.subr.mxu0 0.0
  %1496 = vmatpush1.msra.mxu0 0.0
  %1497 = vmatprep.subr.mxu0 0.0
  %1498 = vmatpush1.msra.mxu0 0.0
  %1499 = vmatprep.subr.mxu0 0.0
  %1500 = vmatpush1.msra.mxu0 0.0
  %1501 = vmatprep.subr.mxu0 0.0
  %1502 = vmatpush1.msra.mxu0 0.0
  %1503 = vmatprep.subr.mxu0 0.0
  %1504 = vmatpush1.msra.mxu0 0.0
  %1505 = vmatprep.subr.mxu0 0.0
  %1506 = vmatpush1.msra.mxu0 0.0
  %1507 = vmatprep.subr.mxu0 0.0
  %1508 = vmatpush1.msra.mxu0 0.0
  %1509 = vmatprep.subr.mxu0 0.0
  %1510 = vmatpush1.msra.mxu0 0.0
  %1511 = vmatprep.subr.mxu0 0.0
  %1512 = vmatpush1.msra.mxu0 0.0
  %1513 = vmatprep.subr.mxu0 0.0
  %1514 = vmatpush1.msra.mxu0 0.0
  %1515 = vmatprep.subr.mxu0 0.0
  %1516 = vmatpush1.msra.mxu0 0.0
  %1517 = vmatprep.subr.mxu0 0.0
  %1518 = vmatpush1.msra.mxu0 0.0
  %1519 = vmatprep.subr.mxu0 0.0
  %1520 = vmatpush1.msra.mxu0 0.0
  %1521 = vmatprep.subr.mxu0 0.0
  %1522 = vmatpush1.msra.mxu0 0.0
  %1523 = vmatprep.subr.mxu0 0.0
  %1524 = vmatpush1.msra.mxu0 0.0
  %1525 = vmatprep.subr.mxu0 0.0
  %1526 = vmatpush1.msra.mxu0 0.0
  %1527 = vmatprep.subr.mxu0 0.0
  %1528 = vmatpush1.msra.mxu0 0.0
  %1529 = vmatprep.subr.mxu0 0.0
  %1530 = vmatpush1.msra.mxu0 0.0
  %1531 = vmatprep.subr.mxu0 0.0
  %1532 = vmatpush1.msra.mxu0 0.0
  %1533 = vmatprep.subr.mxu0 0.0
  %1534 = vmatpush1.msra.mxu0 0.0
  %1535 = vmatprep.subr.mxu0 0.0
  %1536 = vmatpush1.msra.mxu0 0.0
  %1537 = vmatprep.subr.mxu0 0.0
  %1538 = vmatpush1.msra.mxu0 0.0
  %1539 = vmatprep.subr.mxu0 0.0
  %1540 = vmatpush1.msra.mxu0 0.0
  %1541 = vmatprep.subr.mxu0 0.0
  %1542 = vmatpush1.msra.mxu0 0.0
  %1543 = vmatprep.mubr.f32.mxu0 0.0
  %v1544 = vand.u32 %v728, 4294901760
  %1545 = vmatmul.mubr.f32.gmra.mrb[0].mxu0 %v1544
  %v1546 = vpop.f32.mrb[0].mxu0
  %v1547 = vadd.f32 %v1473, %v1546
  %v1548 = vpop.f32.mrb[0].mxu0
  %1549 = vdwg.mxu0
  %1550 = vmatprep.subr.mxu0 0.0
  %v1551 = vand.u32 %v724, 4294901760
  %1552 = vmatpush1.msra.mxu0 %v1551
  %1553 = vmatprep.subr.mxu0 0.0
  %1554 = vmatpush1.msra.mxu0 0.0
  %1555 = vmatprep.subr.mxu0 0.0
  %1556 = vmatpush1.msra.mxu0 0.0
  %1557 = vmatprep.subr.mxu0 0.0
  %1558 = vmatpush1.msra.mxu0 0.0
  %1559 = vmatprep.subr.mxu0 0.0
  %1560 = vmatpush1.msra.mxu0 0.0
  %1561 = vmatprep.subr.mxu0 0.0
  %1562 = vmatpush1.msra.mxu0 0.0
  %1563 = vmatprep.subr.mxu0 0.0
  %1564 = vmatpush1.msra.mxu0 0.0
  %1565 = vmatprep.subr.mxu0 0.0
  %1566 = vmatpush1.msra.mxu0 0.0
  %1567 = vmatprep.subr.mxu0 0.0
  %1568 = vmatpush1.msra.mxu0 0.0
  %1569 = vmatprep.subr.mxu0 0.0
  %1570 = vmatpush1.msra.mxu0 0.0
  %1571 = vmatprep.subr.mxu0 0.0
  %1572 = vmatpush1.msra.mxu0 0.0
  %1573 = vmatprep.subr.mxu0 0.0
  %1574 = vmatpush1.msra.mxu0 0.0
  %1575 = vmatprep.subr.mxu0 0.0
  %1576 = vmatpush1.msra.mxu0 0.0
  %1577 = vmatprep.subr.mxu0 0.0
  %1578 = vmatpush1.msra.mxu0 0.0
  %1579 = vmatprep.subr.mxu0 0.0
  %1580 = vmatpush1.msra.mxu0 0.0
  %1581 = vmatprep.subr.mxu0 0.0
  %1582 = vmatpush1.msra.mxu0 0.0
  %1583 = vmatprep.subr.mxu0 0.0
  %1584 = vmatpush1.msra.mxu0 0.0
  %1585 = vmatprep.subr.mxu0 0.0
  %1586 = vmatpush1.msra.mxu0 0.0
  %1587 = vmatprep.subr.mxu0 0.0
  %1588 = vmatpush1.msra.mxu0 0.0
  %1589 = vmatprep.subr.mxu0 0.0
  %1590 = vmatpush1.msra.mxu0 0.0
  %1591 = vmatprep.subr.mxu0 0.0
  %1592 = vmatpush1.msra.mxu0 0.0
  %1593 = vmatprep.subr.mxu0 0.0
  %1594 = vmatpush1.msra.mxu0 0.0
  %1595 = vmatprep.subr.mxu0 0.0
  %1596 = vmatpush1.msra.mxu0 0.0
  %1597 = vmatprep.subr.mxu0 0.0
  %1598 = vmatpush1.msra.mxu0 0.0
  %1599 = vmatprep.subr.mxu0 0.0
  %1600 = vmatpush1.msra.mxu0 0.0
  %1601 = vmatprep.subr.mxu0 0.0
  %1602 = vmatpush1.msra.mxu0 0.0
  %1603 = vmatprep.subr.mxu0 0.0
  %1604 = vmatpush1.msra.mxu0 0.0
  %1605 = vmatprep.subr.mxu0 0.0
  %1606 = vmatpush1.msra.mxu0 0.0
  %1607 = vmatprep.subr.mxu0 0.0
  %1608 = vmatpush1.msra.mxu0 0.0
  %1609 = vmatprep.subr.mxu0 0.0
  %1610 = vmatpush1.msra.mxu0 0.0
  %1611 = vmatprep.subr.mxu0 0.0
  %1612 = vmatpush1.msra.mxu0 0.0
  %1613 = vmatprep.subr.mxu0 0.0
  %1614 = vmatpush1.msra.mxu0 0.0
  %1615 = vmatprep.mubr.f32.mxu0 0.0
  %v1616 = vand.u32 %v728, 4294901760
  %1617 = vmatmul.mubr.f32.gmra.mrb[0].mxu0 %v1616
  %v1618 = vpop.f32.mrb[0].mxu0
  %v1619 = vadd.f32 %v1547, %v1618
  %v1620 = vpop.f32.mrb[0].mxu0
  %1621 = vdwg.mxu0
  %v1622 = vmul.f32 %v1173, %v1173
  %v1623 = vmul.f32 %v1619, %v1619
  %v1624 = vadd.f32 %v1622, %v1623
  %v1625 = vld [vmem:[#allocation2] sm:$0xff]
  %v1626 = vld [vmem:[%s53] sm:$0xff]
  %v1627 = vld [vmem:[%s53 + $0x8] sm:$0xff]
  %v1628 = vld [vmem:[%s53 + $0x10] sm:$0xff]
  %v1629 = vld [vmem:[%s53 + $0x18] sm:$0xff]
  %v1630 = vld [vmem:[%s53 + $0x20] sm:$0xff]
  %v1631 = vld [vmem:[%s53 + $0x28] sm:$0xff]
  %v1632 = vld [vmem:[%s53 + $0x30] sm:$0xff]
  %v1633 = vld [vmem:[%s53 + $0x38] sm:$0xff]
  %v1634 = vld [vmem:[%s53 + $0x40] sm:$0xff]
  %v1635 = vld [vmem:[%s53 + $0x48] sm:$0xff]
  %v1636 = vld [vmem:[%s53 + $0x50] sm:$0xff]
  %v1637 = vld [vmem:[%s53 + $0x58] sm:$0xff]
  %v1638 = vld [vmem:[%s53 + $0x60] sm:$0xff]
  %v1639 = vld [vmem:[%s53 + $0x68] sm:$0xff]
  %v1640 = vld [vmem:[%s53 + $0x70] sm:$0xff]
  %v1641 = vld [vmem:[%s53 + $0x78] sm:$0xff]
  %1642 = vmatprep.subr.mxu0 0.0
  %v1643 = vand.u32 %v1626, 4294901760
  %1644 = vmatpush1.msra.mxu0 %v1643
  %1645 = vmatprep.subr.mxu0 0.0
  %v1646 = vand.u32 %v1627, 4294901760
  %1647 = vmatpush1.msra.mxu0 %v1646
  %1648 = vmatprep.subr.mxu0 0.0
  %v1649 = vand.u32 %v1628, 4294901760
  %1650 = vmatpush1.msra.mxu0 %v1649
  %1651 = vmatprep.subr.mxu0 0.0
  %v1652 = vand.u32 %v1629, 4294901760
  %1653 = vmatpush1.msra.mxu0 %v1652
  %1654 = vmatprep.subr.mxu0 0.0
  %v1655 = vand.u32 %v1630, 4294901760
  %1656 = vmatpush1.msra.mxu0 %v1655
  %1657 = vmatprep.subr.mxu0 0.0
  %v1658 = vand.u32 %v1631, 4294901760
  %1659 = vmatpush1.msra.mxu0 %v1658
  %1660 = vmatprep.subr.mxu0 0.0
  %v1661 = vand.u32 %v1632, 4294901760
  %1662 = vmatpush1.msra.mxu0 %v1661
  %1663 = vmatprep.subr.mxu0 0.0
  %v1664 = vand.u32 %v1633, 4294901760
  %1665 = vmatpush1.msra.mxu0 %v1664
  %1666 = vmatprep.subr.mxu0 0.0
  %v1667 = vand.u32 %v1634, 4294901760
  %1668 = vmatpush1.msra.mxu0 %v1667
  %1669 = vmatprep.subr.mxu0 0.0
  %v1670 = vand.u32 %v1635, 4294901760
  %1671 = vmatpush1.msra.mxu0 %v1670
  %1672 = vmatprep.subr.mxu0 0.0
  %v1673 = vand.u32 %v1636, 4294901760
  %1674 = vmatpush1.msra.mxu0 %v1673
  %1675 = vmatprep.subr.mxu0 0.0
  %v1676 = vand.u32 %v1637, 4294901760
  %1677 = vmatpush1.msra.mxu0 %v1676
  %1678 = vmatprep.subr.mxu0 0.0
  %v1679 = vand.u32 %v1638, 4294901760
  %1680 = vmatpush1.msra.mxu0 %v1679
  %1681 = vmatprep.subr.mxu0 0.0
  %v1682 = vand.u32 %v1639, 4294901760
  %1683 = vmatpush1.msra.mxu0 %v1682
  %1684 = vmatprep.subr.mxu0 0.0
  %v1685 = vand.u32 %v1640, 4294901760
  %1686 = vmatpush1.msra.mxu0 %v1685
  %1687 = vmatprep.subr.mxu0 0.0
  %v1688 = vand.u32 %v1641, 4294901760
  %1689 = vmatpush1.msra.mxu0 %v1688
  %1690 = vmatprep.subr.mxu0 0.0
  %1691 = vmatpush1.msra.mxu0 0.0
  %1692 = vmatprep.subr.mxu0 0.0
  %1693 = vmatpush1.msra.mxu0 0.0
  %1694 = vmatprep.subr.mxu0 0.0
  %1695 = vmatpush1.msra.mxu0 0.0
  %1696 = vmatprep.subr.mxu0 0.0
  %1697 = vmatpush1.msra.mxu0 0.0
  %1698 = vmatprep.subr.mxu0 0.0
  %1699 = vmatpush1.msra.mxu0 0.0
  %1700 = vmatprep.subr.mxu0 0.0
  %1701 = vmatpush1.msra.mxu0 0.0
  %1702 = vmatprep.subr.mxu0 0.0
  %1703 = vmatpush1.msra.mxu0 0.0
  %1704 = vmatprep.subr.mxu0 0.0
  %1705 = vmatpush1.msra.mxu0 0.0
  %1706 = vmatprep.subr.mxu0 0.0
  %1707 = vmatpush1.msra.mxu0 0.0
  %1708 = vmatprep.subr.mxu0 0.0
  %1709 = vmatpush1.msra.mxu0 0.0
  %1710 = vmatprep.subr.mxu0 0.0
  %1711 = vmatpush1.msra.mxu0 0.0
  %1712 = vmatprep.subr.mxu0 0.0
  %1713 = vmatpush1.msra.mxu0 0.0
  %1714 = vmatprep.subr.mxu0 0.0
  %1715 = vmatpush1.msra.mxu0 0.0
  %1716 = vmatprep.subr.mxu0 0.0
  %1717 = vmatpush1.msra.mxu0 0.0
  %1718 = vmatprep.subr.mxu0 0.0
  %1719 = vmatpush1.msra.mxu0 0.0
  %1720 = vmatprep.subr.mxu0 0.0
  %1721 = vmatpush1.msra.mxu0 0.0
  %1722 = vmatprep.mubr.f32.mxu0 0.0
  %v1723 = vand.u32 %v1624, 4294901760
  %v1724 = vsub.f32 %v1624, %v1723
  %v1725 = vand.u32 %v1724, 4294901760
  %v1726 = vsub.f32 %v1724, %v1725
  %v1727 = vand.u32 %v1726, 4294901760
  %1728 = vmatmul.mubr.f32.gmra.mrb[0].mxu0 %v1727
  %v1729 = vpop.f32.mrb[0].mxu0
  %v1730 = vadd.f32 0.0, %v1729
  %v1731 = vpop.f32.mrb[0].mxu0
  %1732 = vdwg.mxu0
  %1733 = vmatprep.subr.mxu0 0.0
  %v1734 = vand.u32 %v1626, 4294901760
  %v1735 = vsub.f32 %v1626, %v1734
  %v1736 = vand.u32 %v1735, 4294901760
  %v1737 = vsub.f32 %v1735, %v1736
  %v1738 = vand.u32 %v1737, 4294901760
  %1739 = vmatpush1.msra.mxu0 %v1738
  %1740 = vmatprep.subr.mxu0 0.0
  %v1741 = vand.u32 %v1627, 4294901760
  %v1742 = vsub.f32 %v1627, %v1741
  %v1743 = vand.u32 %v1742, 4294901760
  %v1744 = vsub.f32 %v1742, %v1743
  %v1745 = vand.u32 %v1744, 4294901760
  %1746 = vmatpush1.msra.mxu0 %v1745
  %1747 = vmatprep.subr.mxu0 0.0
  %v1748 = vand.u32 %v1628, 4294901760
  %v1749 = vsub.f32 %v1628, %v1748
  %v1750 = vand.u32 %v1749, 4294901760
  %v1751 = vsub.f32 %v1749, %v1750
  %v1752 = vand.u32 %v1751, 4294901760
  %1753 = vmatpush1.msra.mxu0 %v1752
  %1754 = vmatprep.subr.mxu0 0.0
  %v1755 = vand.u32 %v1629, 4294901760
  %v1756 = vsub.f32 %v1629, %v1755
  %v1757 = vand.u32 %v1756, 4294901760
  %v1758 = vsub.f32 %v1756, %v1757
  %v1759 = vand.u32 %v1758, 4294901760
  %1760 = vmatpush1.msra.mxu0 %v1759
  %1761 = vmatprep.subr.mxu0 0.0
  %v1762 = vand.u32 %v1630, 4294901760
  %v1763 = vsub.f32 %v1630, %v1762
  %v1764 = vand.u32 %v1763, 4294901760
  %v1765 = vsub.f32 %v1763, %v1764
  %v1766 = vand.u32 %v1765, 4294901760
  %1767 = vmatpush1.msra.mxu0 %v1766
  %1768 = vmatprep.subr.mxu0 0.0
  %v1769 = vand.u32 %v1631, 4294901760
  %v1770 = vsub.f32 %v1631, %v1769
  %v1771 = vand.u32 %v1770, 4294901760
  %v1772 = vsub.f32 %v1770, %v1771
  %v1773 = vand.u32 %v1772, 4294901760
  %1774 = vmatpush1.msra.mxu0 %v1773
  %1775 = vmatprep.subr.mxu0 0.0
  %v1776 = vand.u32 %v1632, 4294901760
  %v1777 = vsub.f32 %v1632, %v1776
  %v1778 = vand.u32 %v1777, 4294901760
  %v1779 = vsub.f32 %v1777, %v1778
  %v1780 = vand.u32 %v1779, 4294901760
  %1781 = vmatpush1.msra.mxu0 %v1780
  %1782 = vmatprep.subr.mxu0 0.0
  %v1783 = vand.u32 %v1633, 4294901760
  %v1784 = vsub.f32 %v1633, %v1783
  %v1785 = vand.u32 %v1784, 4294901760
  %v1786 = vsub.f32 %v1784, %v1785
  %v1787 = vand.u32 %v1786, 4294901760
  %1788 = vmatpush1.msra.mxu0 %v1787
  %1789 = vmatprep.subr.mxu0 0.0
  %v1790 = vand.u32 %v1634, 4294901760
  %v1791 = vsub.f32 %v1634, %v1790
  %v1792 = vand.u32 %v1791, 4294901760
  %v1793 = vsub.f32 %v1791, %v1792
  %v1794 = vand.u32 %v1793, 4294901760
  %1795 = vmatpush1.msra.mxu0 %v1794
  %1796 = vmatprep.subr.mxu0 0.0
  %v1797 = vand.u32 %v1635, 4294901760
  %v1798 = vsub.f32 %v1635, %v1797
  %v1799 = vand.u32 %v1798, 4294901760
  %v1800 = vsub.f32 %v1798, %v1799
  %v1801 = vand.u32 %v1800, 4294901760
  %1802 = vmatpush1.msra.mxu0 %v1801
  %1803 = vmatprep.subr.mxu0 0.0
  %v1804 = vand.u32 %v1636, 4294901760
  %v1805 = vsub.f32 %v1636, %v1804
  %v1806 = vand.u32 %v1805, 4294901760
  %v1807 = vsub.f32 %v1805, %v1806
  %v1808 = vand.u32 %v1807, 4294901760
  %1809 = vmatpush1.msra.mxu0 %v1808
  %1810 = vmatprep.subr.mxu0 0.0
  %v1811 = vand.u32 %v1637, 4294901760
  %v1812 = vsub.f32 %v1637, %v1811
  %v1813 = vand.u32 %v1812, 4294901760
  %v1814 = vsub.f32 %v1812, %v1813
  %v1815 = vand.u32 %v1814, 4294901760
  %1816 = vmatpush1.msra.mxu0 %v1815
  %1817 = vmatprep.subr.mxu0 0.0
  %v1818 = vand.u32 %v1638, 4294901760
  %v1819 = vsub.f32 %v1638, %v1818
  %v1820 = vand.u32 %v1819, 4294901760
  %v1821 = vsub.f32 %v1819, %v1820
  %v1822 = vand.u32 %v1821, 4294901760
  %1823 = vmatpush1.msra.mxu0 %v1822
  %1824 = vmatprep.subr.mxu0 0.0
  %v1825 = vand.u32 %v1639, 4294901760
  %v1826 = vsub.f32 %v1639, %v1825
  %v1827 = vand.u32 %v1826, 4294901760
  %v1828 = vsub.f32 %v1826, %v1827
  %v1829 = vand.u32 %v1828, 4294901760
  %1830 = vmatpush1.msra.mxu0 %v1829
  %1831 = vmatprep.subr.mxu0 0.0
  %v1832 = vand.u32 %v1640, 4294901760
  %v1833 = vsub.f32 %v1640, %v1832
  %v1834 = vand.u32 %v1833, 4294901760
  %v1835 = vsub.f32 %v1833, %v1834
  %v1836 = vand.u32 %v1835, 4294901760
  %1837 = vmatpush1.msra.mxu0 %v1836
  %1838 = vmatprep.subr.mxu0 0.0
  %v1839 = vand.u32 %v1641, 4294901760
  %v1840 = vsub.f32 %v1641, %v1839
  %v1841 = vand.u32 %v1840, 4294901760
  %v1842 = vsub.f32 %v1840, %v1841
  %v1843 = vand.u32 %v1842, 4294901760
  %1844 = vmatpush1.msra.mxu0 %v1843
  %1845 = vmatprep.subr.mxu0 0.0
  %1846 = vmatpush1.msra.mxu0 0.0
  %1847 = vmatprep.subr.mxu0 0.0
  %1848 = vmatpush1.msra.mxu0 0.0
  %1849 = vmatprep.subr.mxu0 0.0
  %1850 = vmatpush1.msra.mxu0 0.0
  %1851 = vmatprep.subr.mxu0 0.0
  %1852 = vmatpush1.msra.mxu0 0.0
  %1853 = vmatprep.subr.mxu0 0.0
  %1854 = vmatpush1.msra.mxu0 0.0
  %1855 = vmatprep.subr.mxu0 0.0
  %1856 = vmatpush1.msra.mxu0 0.0
  %1857 = vmatprep.subr.mxu0 0.0
  %1858 = vmatpush1.msra.mxu0 0.0
  %1859 = vmatprep.subr.mxu0 0.0
  %1860 = vmatpush1.msra.mxu0 0.0
  %1861 = vmatprep.subr.mxu0 0.0
  %1862 = vmatpush1.msra.mxu0 0.0
  %1863 = vmatprep.subr.mxu0 0.0
  %1864 = vmatpush1.msra.mxu0 0.0
  %1865 = vmatprep.subr.mxu0 0.0
  %1866 = vmatpush1.msra.mxu0 0.0
  %1867 = vmatprep.subr.mxu0 0.0
  %1868 = vmatpush1.msra.mxu0 0.0
  %1869 = vmatprep.subr.mxu0 0.0
  %1870 = vmatpush1.msra.mxu0 0.0
  %1871 = vmatprep.subr.mxu0 0.0
  %1872 = vmatpush1.msra.mxu0 0.0
  %1873 = vmatprep.subr.mxu0 0.0
  %1874 = vmatpush1.msra.mxu0 0.0
  %1875 = vmatprep.subr.mxu0 0.0
  %1876 = vmatpush1.msra.mxu0 0.0
  %1877 = vmatprep.mubr.f32.mxu0 0.0
  %v1878 = vand.u32 %v1624, 4294901760
  %1879 = vmatmul.mubr.f32.gmra.mrb[0].mxu0 %v1878
  %v1880 = vpop.f32.mrb[0].mxu0
  %v1881 = vadd.f32 %v1730, %v1880
  %v1882 = vpop.f32.mrb[0].mxu0
  %1883 = vdwg.mxu0
  %1884 = vmatprep.subr.mxu0 0.0
  %v1885 = vand.u32 %v1626, 4294901760
  %v1886 = vsub.f32 %v1626, %v1885
  %1887 = vmatpush1.msra.mxu0 %v1886
  %1888 = vmatprep.subr.mxu0 0.0
  %v1889 = vand.u32 %v1627, 4294901760
  %v1890 = vsub.f32 %v1627, %v1889
  %1891 = vmatpush1.msra.mxu0 %v1890
  %1892 = vmatprep.subr.mxu0 0.0
  %v1893 = vand.u32 %v1628, 4294901760
  %v1894 = vsub.f32 %v1628, %v1893
  %1895 = vmatpush1.msra.mxu0 %v1894
  %1896 = vmatprep.subr.mxu0 0.0
  %v1897 = vand.u32 %v1629, 4294901760
  %v1898 = vsub.f32 %v1629, %v1897
  %1899 = vmatpush1.msra.mxu0 %v1898
  %1900 = vmatprep.subr.mxu0 0.0
  %v1901 = vand.u32 %v1630, 4294901760
  %v1902 = vsub.f32 %v1630, %v1901
  %1903 = vmatpush1.msra.mxu0 %v1902
  %1904 = vmatprep.subr.mxu0 0.0
  %v1905 = vand.u32 %v1631, 4294901760
  %v1906 = vsub.f32 %v1631, %v1905
  %1907 = vmatpush1.msra.mxu0 %v1906
  %1908 = vmatprep.subr.mxu0 0.0
  %v1909 = vand.u32 %v1632, 4294901760
  %v1910 = vsub.f32 %v1632, %v1909
  %1911 = vmatpush1.msra.mxu0 %v1910
  %1912 = vmatprep.subr.mxu0 0.0
  %v1913 = vand.u32 %v1633, 4294901760
  %v1914 = vsub.f32 %v1633, %v1913
  %1915 = vmatpush1.msra.mxu0 %v1914
  %1916 = vmatprep.subr.mxu0 0.0
  %v1917 = vand.u32 %v1634, 4294901760
  %v1918 = vsub.f32 %v1634, %v1917
  %1919 = vmatpush1.msra.mxu0 %v1918
  %1920 = vmatprep.subr.mxu0 0.0
  %v1921 = vand.u32 %v1635, 4294901760
  %v1922 = vsub.f32 %v1635, %v1921
  %1923 = vmatpush1.msra.mxu0 %v1922
  %1924 = vmatprep.subr.mxu0 0.0
  %v1925 = vand.u32 %v1636, 4294901760
  %v1926 = vsub.f32 %v1636, %v1925
  %1927 = vmatpush1.msra.mxu0 %v1926
  %1928 = vmatprep.subr.mxu0 0.0
  %v1929 = vand.u32 %v1637, 4294901760
  %v1930 = vsub.f32 %v1637, %v1929
  %1931 = vmatpush1.msra.mxu0 %v1930
  %1932 = vmatprep.subr.mxu0 0.0
  %v1933 = vand.u32 %v1638, 4294901760
  %v1934 = vsub.f32 %v1638, %v1933
  %1935 = vmatpush1.msra.mxu0 %v1934
  %1936 = vmatprep.subr.mxu0 0.0
  %v1937 = vand.u32 %v1639, 4294901760
  %v1938 = vsub.f32 %v1639, %v1937
  %1939 = vmatpush1.msra.mxu0 %v1938
  %1940 = vmatprep.subr.mxu0 0.0
  %v1941 = vand.u32 %v1640, 4294901760
  %v1942 = vsub.f32 %v1640, %v1941
  %1943 = vmatpush1.msra.mxu0 %v1942
  %1944 = vmatprep.subr.mxu0 0.0
  %v1945 = vand.u32 %v1641, 4294901760
  %v1946 = vsub.f32 %v1641, %v1945
  %1947 = vmatpush1.msra.mxu0 %v1946
  %1948 = vmatprep.subr.mxu0 0.0
  %1949 = vmatpush1.msra.mxu0 0.0
  %1950 = vmatprep.subr.mxu0 0.0
  %1951 = vmatpush1.msra.mxu0 0.0
  %1952 = vmatprep.subr.mxu0 0.0
  %1953 = vmatpush1.msra.mxu0 0.0
  %1954 = vmatprep.subr.mxu0 0.0
  %1955 = vmatpush1.msra.mxu0 0.0
  %1956 = vmatprep.subr.mxu0 0.0
  %1957 = vmatpush1.msra.mxu0 0.0
  %1958 = vmatprep.subr.mxu0 0.0
  %1959 = vmatpush1.msra.mxu0 0.0
  %1960 = vmatprep.subr.mxu0 0.0
  %1961 = vmatpush1.msra.mxu0 0.0
  %1962 = vmatprep.subr.mxu0 0.0
  %1963 = vmatpush1.msra.mxu0 0.0
  %1964 = vmatprep.subr.mxu0 0.0
  %1965 = vmatpush1.msra.mxu0 0.0
  %1966 = vmatprep.subr.mxu0 0.0
  %1967 = vmatpush1.msra.mxu0 0.0
  %1968 = vmatprep.subr.mxu0 0.0
  %1969 = vmatpush1.msra.mxu0 0.0
  %1970 = vmatprep.subr.mxu0 0.0
  %1971 = vmatpush1.msra.mxu0 0.0
  %1972 = vmatprep.subr.mxu0 0.0
  %1973 = vmatpush1.msra.mxu0 0.0
  %1974 = vmatprep.subr.mxu0 0.0
  %1975 = vmatpush1.msra.mxu0 0.0
  %1976 = vmatprep.subr.mxu0 0.0
  %1977 = vmatpush1.msra.mxu0 0.0
  %1978 = vmatprep.subr.mxu0 0.0
  %1979 = vmatpush1.msra.mxu0 0.0
  %1980 = vmatprep.mubr.f32.mxu0 0.0
  %v1981 = vand.u32 %v1624, 4294901760
  %v1982 = vsub.f32 %v1624, %v1981
  %1983 = vmatmul.mubr.f32.gmra.mrb[0].mxu0 %v1982
  %v1984 = vpop.f32.mrb[0].mxu0
  %v1985 = vadd.f32 %v1881, %v1984
  %v1986 = vpop.f32.mrb[0].mxu0
  %1987 = vdwg.mxu0
  %1988 = vmatprep.subr.mxu0 0.0
  %v1989 = vand.u32 %v1626, 4294901760
  %1990 = vmatpush1.msra.mxu0 %v1989
  %1991 = vmatprep.subr.mxu0 0.0
  %v1992 = vand.u32 %v1627, 4294901760
  %1993 = vmatpush1.msra.mxu0 %v1992
  %1994 = vmatprep.subr.mxu0 0.0
  %v1995 = vand.u32 %v1628, 4294901760
  %1996 = vmatpush1.msra.mxu0 %v1995
  %1997 = vmatprep.subr.mxu0 0.0
  %v1998 = vand.u32 %v1629, 4294901760
  %1999 = vmatpush1.msra.mxu0 %v1998
  %2000 = vmatprep.subr.mxu0 0.0
  %v2001 = vand.u32 %v1630, 4294901760
  %2002 = vmatpush1.msra.mxu0 %v2001
  %2003 = vmatprep.subr.mxu0 0.0
  %v2004 = vand.u32 %v1631, 4294901760
  %2005 = vmatpush1.msra.mxu0 %v2004
  %2006 = vmatprep.subr.mxu0 0.0
  %v2007 = vand.u32 %v1632, 4294901760
  %2008 = vmatpush1.msra.mxu0 %v2007
  %2009 = vmatprep.subr.mxu0 0.0
  %v2010 = vand.u32 %v1633, 4294901760
  %2011 = vmatpush1.msra.mxu0 %v2010
  %2012 = vmatprep.subr.mxu0 0.0
  %v2013 = vand.u32 %v1634, 4294901760
  %2014 = vmatpush1.msra.mxu0 %v2013
  %2015 = vmatprep.subr.mxu0 0.0
  %v2016 = vand.u32 %v1635, 4294901760
  %2017 = vmatpush1.msra.mxu0 %v2016
  %2018 = vmatprep.subr.mxu0 0.0
  %v2019 = vand.u32 %v1636, 4294901760
  %2020 = vmatpush1.msra.mxu0 %v2019
  %2021 = vmatprep.subr.mxu0 0.0
  %v2022 = vand.u32 %v1637, 4294901760
  %2023 = vmatpush1.msra.mxu0 %v2022
  %2024 = vmatprep.subr.mxu0 0.0
  %v2025 = vand.u32 %v1638, 4294901760
  %2026 = vmatpush1.msra.mxu0 %v2025
  %2027 = vmatprep.subr.mxu0 0.0
  %v2028 = vand.u32 %v1639, 4294901760
  %2029 = vmatpush1.msra.mxu0 %v2028
  %2030 = vmatprep.subr.mxu0 0.0
  %v2031 = vand.u32 %v1640, 4294901760
  %2032 = vmatpush1.msra.mxu0 %v2031
  %2033 = vmatprep.subr.mxu0 0.0
  %v2034 = vand.u32 %v1641, 4294901760
  %2035 = vmatpush1.msra.mxu0 %v2034
  %2036 = vmatprep.subr.mxu0 0.0
  %2037 = vmatpush1.msra.mxu0 0.0
  %2038 = vmatprep.subr.mxu0 0.0
  %2039 = vmatpush1.msra.mxu0 0.0
  %2040 = vmatprep.subr.mxu0 0.0
  %2041 = vmatpush1.msra.mxu0 0.0
  %2042 = vmatprep.subr.mxu0 0.0
  %2043 = vmatpush1.msra.mxu0 0.0
  %2044 = vmatprep.subr.mxu0 0.0
  %2045 = vmatpush1.msra.mxu0 0.0
  %2046 = vmatprep.subr.mxu0 0.0
  %2047 = vmatpush1.msra.mxu0 0.0
  %2048 = vmatprep.subr.mxu0 0.0
  %2049 = vmatpush1.msra.mxu0 0.0
  %2050 = vmatprep.subr.mxu0 0.0
  %2051 = vmatpush1.msra.mxu0 0.0
  %2052 = vmatprep.subr.mxu0 0.0
  %2053 = vmatpush1.msra.mxu0 0.0
  %2054 = vmatprep.subr.mxu0 0.0
  %2055 = vmatpush1.msra.mxu0 0.0
  %2056 = vmatprep.subr.mxu0 0.0
  %2057 = vmatpush1.msra.mxu0 0.0
  %2058 = vmatprep.subr.mxu0 0.0
  %2059 = vmatpush1.msra.mxu0 0.0
  %2060 = vmatprep.subr.mxu0 0.0
  %2061 = vmatpush1.msra.mxu0 0.0
  %2062 = vmatprep.subr.mxu0 0.0
  %2063 = vmatpush1.msra.mxu0 0.0
  %2064 = vmatprep.subr.mxu0 0.0
  %2065 = vmatpush1.msra.mxu0 0.0
  %2066 = vmatprep.subr.mxu0 0.0
  %2067 = vmatpush1.msra.mxu0 0.0
  %2068 = vmatprep.mubr.f32.mxu0 0.0
  %v2069 = vand.u32 %v1624, 4294901760
  %v2070 = vsub.f32 %v1624, %v2069
  %v2071 = vand.u32 %v2070, 4294901760
  %2072 = vmatmul.mubr.f32.gmra.mrb[0].mxu0 %v2071
  %v2073 = vpop.f32.mrb[0].mxu0
  %v2074 = vadd.f32 %v1985, %v2073
  %v2075 = vpop.f32.mrb[0].mxu0
  %2076 = vdwg.mxu0
  %2077 = vmatprep.subr.mxu0 0.0
  %v2078 = vand.u32 %v1626, 4294901760
  %v2079 = vsub.f32 %v1626, %v2078
  %v2080 = vand.u32 %v2079, 4294901760
  %2081 = vmatpush1.msra.mxu0 %v2080
  %2082 = vmatprep.subr.mxu0 0.0
  %v2083 = vand.u32 %v1627, 4294901760
  %v2084 = vsub.f32 %v1627, %v2083
  %v2085 = vand.u32 %v2084, 4294901760
  %2086 = vmatpush1.msra.mxu0 %v2085
  %2087 = vmatprep.subr.mxu0 0.0
  %v2088 = vand.u32 %v1628, 4294901760
  %v2089 = vsub.f32 %v1628, %v2088
  %v2090 = vand.u32 %v2089, 4294901760
  %2091 = vmatpush1.msra.mxu0 %v2090
  %2092 = vmatprep.subr.mxu0 0.0
  %v2093 = vand.u32 %v1629, 4294901760
  %v2094 = vsub.f32 %v1629, %v2093
  %v2095 = vand.u32 %v2094, 4294901760
  %2096 = vmatpush1.msra.mxu0 %v2095
  %2097 = vmatprep.subr.mxu0 0.0
  %v2098 = vand.u32 %v1630, 4294901760
  %v2099 = vsub.f32 %v1630, %v2098
  %v2100 = vand.u32 %v2099, 4294901760
  %2101 = vmatpush1.msra.mxu0 %v2100
  %2102 = vmatprep.subr.mxu0 0.0
  %v2103 = vand.u32 %v1631, 4294901760
  %v2104 = vsub.f32 %v1631, %v2103
  %v2105 = vand.u32 %v2104, 4294901760
  %2106 = vmatpush1.msra.mxu0 %v2105
  %2107 = vmatprep.subr.mxu0 0.0
  %v2108 = vand.u32 %v1632, 4294901760
  %v2109 = vsub.f32 %v1632, %v2108
  %v2110 = vand.u32 %v2109, 4294901760
  %2111 = vmatpush1.msra.mxu0 %v2110
  %2112 = vmatprep.subr.mxu0 0.0
  %v2113 = vand.u32 %v1633, 4294901760
  %v2114 = vsub.f32 %v1633, %v2113
  %v2115 = vand.u32 %v2114, 4294901760
  %2116 = vmatpush1.msra.mxu0 %v2115
  %2117 = vmatprep.subr.mxu0 0.0
  %v2118 = vand.u32 %v1634, 4294901760
  %v2119 = vsub.f32 %v1634, %v2118
  %v2120 = vand.u32 %v2119, 4294901760
  %2121 = vmatpush1.msra.mxu0 %v2120
  %2122 = vmatprep.subr.mxu0 0.0
  %v2123 = vand.u32 %v1635, 4294901760
  %v2124 = vsub.f32 %v1635, %v2123
  %v2125 = vand.u32 %v2124, 4294901760
  %2126 = vmatpush1.msra.mxu0 %v2125
  %2127 = vmatprep.subr.mxu0 0.0
  %v2128 = vand.u32 %v1636, 4294901760
  %v2129 = vsub.f32 %v1636, %v2128
  %v2130 = vand.u32 %v2129, 4294901760
  %2131 = vmatpush1.msra.mxu0 %v2130
  %2132 = vmatprep.subr.mxu0 0.0
  %v2133 = vand.u32 %v1637, 4294901760
  %v2134 = vsub.f32 %v1637, %v2133
  %v2135 = vand.u32 %v2134, 4294901760
  %2136 = vmatpush1.msra.mxu0 %v2135
  %2137 = vmatprep.subr.mxu0 0.0
  %v2138 = vand.u32 %v1638, 4294901760
  %v2139 = vsub.f32 %v1638, %v2138
  %v2140 = vand.u32 %v2139, 4294901760
  %2141 = vmatpush1.msra.mxu0 %v2140
  %2142 = vmatprep.subr.mxu0 0.0
  %v2143 = vand.u32 %v1639, 4294901760
  %v2144 = vsub.f32 %v1639, %v2143
  %v2145 = vand.u32 %v2144, 4294901760
  %2146 = vmatpush1.msra.mxu0 %v2145
  %2147 = vmatprep.subr.mxu0 0.0
  %v2148 = vand.u32 %v1640, 4294901760
  %v2149 = vsub.f32 %v1640, %v2148
  %v2150 = vand.u32 %v2149, 4294901760
  %2151 = vmatpush1.msra.mxu0 %v2150
  %2152 = vmatprep.subr.mxu0 0.0
  %v2153 = vand.u32 %v1641, 4294901760
  %v2154 = vsub.f32 %v1641, %v2153
  %v2155 = vand.u32 %v2154, 4294901760
  %2156 = vmatpush1.msra.mxu0 %v2155
  %2157 = vmatprep.subr.mxu0 0.0
  %2158 = vmatpush1.msra.mxu0 0.0
  %2159 = vmatprep.subr.mxu0 0.0
  %2160 = vmatpush1.msra.mxu0 0.0
  %2161 = vmatprep.subr.mxu0 0.0
  %2162 = vmatpush1.msra.mxu0 0.0
  %2163 = vmatprep.subr.mxu0 0.0
  %2164 = vmatpush1.msra.mxu0 0.0
  %2165 = vmatprep.subr.mxu0 0.0
  %2166 = vmatpush1.msra.mxu0 0.0
  %2167 = vmatprep.subr.mxu0 0.0
  %2168 = vmatpush1.msra.mxu0 0.0
  %2169 = vmatprep.subr.mxu0 0.0
  %2170 = vmatpush1.msra.mxu0 0.0
  %2171 = vmatprep.subr.mxu0 0.0
  %2172 = vmatpush1.msra.mxu0 0.0
  %2173 = vmatprep.subr.mxu0 0.0
  %2174 = vmatpush1.msra.mxu0 0.0
  %2175 = vmatprep.subr.mxu0 0.0
  %2176 = vmatpush1.msra.mxu0 0.0
  %2177 = vmatprep.subr.mxu0 0.0
  %2178 = vmatpush1.msra.mxu0 0.0
  %2179 = vmatprep.subr.mxu0 0.0
  %2180 = vmatpush1.msra.mxu0 0.0
  %2181 = vmatprep.subr.mxu0 0.0
  %2182 = vmatpush1.msra.mxu0 0.0
  %2183 = vmatprep.subr.mxu0 0.0
  %2184 = vmatpush1.msra.mxu0 0.0
  %2185 = vmatprep.subr.mxu0 0.0
  %2186 = vmatpush1.msra.mxu0 0.0
  %2187 = vmatprep.subr.mxu0 0.0
  %2188 = vmatpush1.msra.mxu0 0.0
  %2189 = vmatprep.mubr.f32.mxu0 0.0
  %v2190 = vand.u32 %v1624, 4294901760
  %2191 = vmatmul.mubr.f32.gmra.mrb[0].mxu0 %v2190
  %v2192 = vpop.f32.mrb[0].mxu0
  %v2193 = vadd.f32 %v2074, %v2192
  %v2194 = vpop.f32.mrb[0].mxu0
  %2195 = vdwg.mxu0
  %2196 = vmatprep.subr.mxu0 0.0
  %v2197 = vand.u32 %v1626, 4294901760
  %2198 = vmatpush1.msra.mxu0 %v2197
  %2199 = vmatprep.subr.mxu0 0.0
  %v2200 = vand.u32 %v1627, 4294901760
  %2201 = vmatpush1.msra.mxu0 %v2200
  %2202 = vmatprep.subr.mxu0 0.0
  %v2203 = vand.u32 %v1628, 4294901760
  %2204 = vmatpush1.msra.mxu0 %v2203
  %2205 = vmatprep.subr.mxu0 0.0
  %v2206 = vand.u32 %v1629, 4294901760
  %2207 = vmatpush1.msra.mxu0 %v2206
  %2208 = vmatprep.subr.mxu0 0.0
  %v2209 = vand.u32 %v1630, 4294901760
  %2210 = vmatpush1.msra.mxu0 %v2209
  %2211 = vmatprep.subr.mxu0 0.0
  %v2212 = vand.u32 %v1631, 4294901760
  %2213 = vmatpush1.msra.mxu0 %v2212
  %2214 = vmatprep.subr.mxu0 0.0
  %v2215 = vand.u32 %v1632, 4294901760
  %2216 = vmatpush1.msra.mxu0 %v2215
  %2217 = vmatprep.subr.mxu0 0.0
  %v2218 = vand.u32 %v1633, 4294901760
  %2219 = vmatpush1.msra.mxu0 %v2218
  %2220 = vmatprep.subr.mxu0 0.0
  %v2221 = vand.u32 %v1634, 4294901760
  %2222 = vmatpush1.msra.mxu0 %v2221
  %2223 = vmatprep.subr.mxu0 0.0
  %v2224 = vand.u32 %v1635, 4294901760
  %2225 = vmatpush1.msra.mxu0 %v2224
  %2226 = vmatprep.subr.mxu0 0.0
  %v2227 = vand.u32 %v1636, 4294901760
  %2228 = vmatpush1.msra.mxu0 %v2227
  %2229 = vmatprep.subr.mxu0 0.0
  %v2230 = vand.u32 %v1637, 4294901760
  %2231 = vmatpush1.msra.mxu0 %v2230
  %2232 = vmatprep.subr.mxu0 0.0
  %v2233 = vand.u32 %v1638, 4294901760
  %2234 = vmatpush1.msra.mxu0 %v2233
  %2235 = vmatprep.subr.mxu0 0.0
  %v2236 = vand.u32 %v1639, 4294901760
  %2237 = vmatpush1.msra.mxu0 %v2236
  %2238 = vmatprep.subr.mxu0 0.0
  %v2239 = vand.u32 %v1640, 4294901760
  %2240 = vmatpush1.msra.mxu0 %v2239
  %2241 = vmatprep.subr.mxu0 0.0
  %v2242 = vand.u32 %v1641, 4294901760
  %2243 = vmatpush1.msra.mxu0 %v2242
  %2244 = vmatprep.subr.mxu0 0.0
  %2245 = vmatpush1.msra.mxu0 0.0
  %2246 = vmatprep.subr.mxu0 0.0
  %2247 = vmatpush1.msra.mxu0 0.0
  %2248 = vmatprep.subr.mxu0 0.0
  %2249 = vmatpush1.msra.mxu0 0.0
  %2250 = vmatprep.subr.mxu0 0.0
  %2251 = vmatpush1.msra.mxu0 0.0
  %2252 = vmatprep.subr.mxu0 0.0
  %2253 = vmatpush1.msra.mxu0 0.0
  %2254 = vmatprep.subr.mxu0 0.0
  %2255 = vmatpush1.msra.mxu0 0.0
  %2256 = vmatprep.subr.mxu0 0.0
  %2257 = vmatpush1.msra.mxu0 0.0
  %2258 = vmatprep.subr.mxu0 0.0
  %2259 = vmatpush1.msra.mxu0 0.0
  %2260 = vmatprep.subr.mxu0 0.0
  %2261 = vmatpush1.msra.mxu0 0.0
  %2262 = vmatprep.subr.mxu0 0.0
  %2263 = vmatpush1.msra.mxu0 0.0
  %2264 = vmatprep.subr.mxu0 0.0
  %2265 = vmatpush1.msra.mxu0 0.0
  %2266 = vmatprep.subr.mxu0 0.0
  %2267 = vmatpush1.msra.mxu0 0.0
  %2268 = vmatprep.subr.mxu0 0.0
  %2269 = vmatpush1.msra.mxu0 0.0
  %2270 = vmatprep.subr.mxu0 0.0
  %2271 = vmatpush1.msra.mxu0 0.0
  %2272 = vmatprep.subr.mxu0 0.0
  %2273 = vmatpush1.msra.mxu0 0.0
  %2274 = vmatprep.subr.mxu0 0.0
  %2275 = vmatpush1.msra.mxu0 0.0
  %2276 = vmatprep.mubr.f32.mxu0 0.0
  %v2277 = vand.u32 %v1624, 4294901760
  %2278 = vmatmul.mubr.f32.gmra.mrb[0].mxu0 %v2277
  %v2279 = vpop.f32.mrb[0].mxu0
  %v2280 = vadd.f32 %v2193, %v2279
  %v2281 = vpop.f32.mrb[0].mxu0
  %2282 = vdwg.mxu0
  %v2283 = vadd.f32 %v1625, %v2280
  %vm2284 = vcmask 7168
  %2285 = vst.msk [vmem:[#allocation2] sm:$0xff] %vm2284, %v2283
  // Predicated region
  $region22: #{tpu_custom_call.1} parent=0 // pred_check
    %p2286 = pneg %p56
  $region23: #{tpu_custom_call.1} parent=0 // pred_check_branch
    %2288 = sbr.rel (%p2286) target = $region25
  $region24: #{tpu_custom_call.1} parent=0 // pred_region
    %v2289 = vld [vmem:[#allocation2] sm:$0xff]
    %2290 = vst.msk [vmem:[%s4] sm:$0xff] %vm2284, %v2289
  $region25: #{tpu_custom_call.1} parent=0 // pred_fallthru
    _
  // Predicated region
  $region26: #{tpu_custom_call.1} parent=0 // pred_check
    _
  $region27: #{tpu_custom_call.1} parent=0 // pred_check_branch
    %2292 = sbr.rel (0) target = $region29
  $region28: #{tpu_custom_call.1} parent=0 // pred_region
    _
  $region29: #{tpu_custom_call.1} parent=0 // pred_fallthru
    _
  // Predicated region
  $region30: #{tpu_custom_call.1} parent=0 // pred_check
    _
  $region31: #{tpu_custom_call.1} parent=0 // pred_check_branch
    %2294 = sbr.rel (0) target = $region33
  $region32: #{tpu_custom_call.1} parent=0 // pred_region
    _
  $region33: #{tpu_custom_call.1} parent=0 // pred_fallthru
    _

</llo_original>
